<compile_context>
chip_gen: v7x
topology: tpu7x:2x2x1
jax: 0.10.0
libtpu: 0.0.40
codegen_flags: <defaults>
</compile_context>

<pallas_src>
import functools

import jax
import jax.numpy as jnp
import numpy as np
from jax import lax
from jax.experimental import pallas as pl
from jax.experimental.pallas import tpu as pltpu


def _round_up(x, m):
    return (x + m - 1) // m * m


# --------------------------------------------------------------------------
# Kernel
# --------------------------------------------------------------------------
def _conn3_kernel(x_ref, mask_ref, *rest, W, cin_eff, k_alloc):
    """Fused conn3 for one group of lane-packed images.

    x_ref   : (1, Cin0p, Q)  input activations, Q = NB * H * W (NB images
                             laid side-by-side on the lane axis)
    mask_ref: (9, Q)         {0,1} validity mask per 3x3 tap (pad=1 halo,
                             tiled per image -> also guards image boundaries)
    rest    : w_0 ... w_{L-1}, o_ref, xcol_ref
              w_i     : (Cout, k_alloc) folded conv3x3 + conv1x1 + bias
              o_ref   : (1, Cout, Q)
              xcol_ref: (k_alloc, Q)  VMEM scratch holding the im2col matrix
    """
    o_ref, xcol_ref = rest[-2], rest[-1]
    w_refs = rest[:-2]
    Q = x_ref.shape[-1]

    a = x_ref[0].astype(jnp.float32)                  # (Cin0p, Q)
    m = mask_ref[...]                                  # (9, Q)

    taps = [(dy, dx) for dy in (-1, 0, 1) for dx in (-1, 0, 1)]
    # Hoisted per-tap mask rows (center tap needs no mask); reused by all
    # layers and not re-sliced inside the loop.
    mrows = [None if (dy == 0 and dx == 0) else m[t:t + 1, :]
             for t, (dy, dx) in enumerate(taps)]

    ones_from = k_alloc          # rows [ones_from, k_alloc) are known-ones
    for li, w_ref in enumerate(w_refs):
        cin = cin_eff[li]
        nine = 9 * cin

        # im2col straight into the VMEM scratch: one rolled + masked tap
        # per sublane band.  All offsets are static; cin is a multiple of 8
        # for the padded configs -> aligned stores.
        for t, (dy, dx) in enumerate(taps):
            if dy == 0 and dx == 0:
                xcol_ref[t * cin:(t + 1) * cin, :] = a
            else:
                k = dy * W + dx                                 # lane offset
                s = pltpu.roll(a, (-k) % Q, axis=1)             # XLU rotate
                xcol_ref[t * cin:(t + 1) * cin, :] = s * mrows[t]

        # Bias fold: keep rows [nine, k_alloc) filled with ones; the weight
        # column `nine` carries the bias, columns beyond are zero.  Only the
        # missing band is (re)filled (typically just once, at layer 0).
        if nine < ones_from:
            xcol_ref[nine:ones_from, :] = jnp.ones(
                (ones_from - nine, Q), jnp.float32)
        ones_from = nine

        # One fat MXU matmul per layer (3x3 conv + 1x1 conv + bias fused).
        a = lax.dot_general(w_ref[...], xcol_ref[...],
                            (((1,), (0,)), ((), ())),
                            preferred_element_type=jnp.float32)

    o_ref[0] = a.astype(o_ref.dtype)


# --------------------------------------------------------------------------
# Host-side helpers
# --------------------------------------------------------------------------
def _make_tap_masks(H, W, nb):
    """(9, nb*H*W) float32 masks: 1 where the (dy,dx)-shifted pixel is
    in-bounds (same mask tiled per packed image)."""
    P = H * W
    h = np.arange(P) // W
    w = np.arange(P) % W
    masks = []
    for dy in (-1, 0, 1):
        for dx in (-1, 0, 1):
            ok = ((h + dy >= 0) & (h + dy < H) & (w + dx >= 0) & (w + dx < W))
            masks.append(ok.astype(np.float32))
    m9 = np.stack(masks)                              # (9, P)
    return jnp.asarray(np.tile(m9, (1, nb)))          # (9, nb*P)


def _fold_connection(p, cin_pad, k_alloc):
    """Fold conv3x3 + conv1x1 + bias of one `connection` into a single
    (2*Ch, k_alloc) matrix.  Column layout: tap t occupies columns
    [t*cin_pad, (t+1)*cin_pad) with tap order t = (dy+1)*3 + (dx+1); the 1x1
    conv lives in the center tap (t=4); column 9*cin_pad is the bias
    (multiplied by a ones row in the kernel); remaining columns are zero."""
    w3, b3, w1, b1 = p["w3"], p["b3"], p["w1"], p["b1"]   # OIHW / (Ch, Cin)
    ch, cin = w3.shape[0], w3.shape[1]
    w3 = jnp.pad(w3, ((0, 0), (0, cin_pad - cin), (0, 0), (0, 0)))
    w1 = jnp.pad(w1, ((0, 0), (0, cin_pad - cin)))
    top = jnp.transpose(w3.reshape(ch, cin_pad, 9), (0, 2, 1))      # (Ch,9,Cp)
    bot = jnp.zeros((ch, 9, cin_pad), w1.dtype).at[:, 4, :].set(w1)
    wtap = jnp.concatenate([top, bot], axis=0).reshape(2 * ch, 9 * cin_pad)
    bias = jnp.concatenate([b3, b1]).reshape(2 * ch, 1)
    w_full = jnp.zeros((2 * ch, k_alloc), jnp.float32)
    w_full = w_full.at[:, :9 * cin_pad].set(wtap.astype(jnp.float32))
    w_full = w_full.at[:, 9 * cin_pad:9 * cin_pad + 1].set(
        bias.astype(jnp.float32))
    return w_full


def _pick_images_per_step(n):
    """Fatten grid steps but keep >= 2 'parallel' steps for v7x's 2 TCs."""
    if n <= 1:
        return 1
    nb = n // 2
    while nb > 1 and n % nb != 0:
        nb -= 1
    return max(nb, 1)


def conn3_pallas(x_nchw, params, images_per_step=None):
    """Full conn3 forward.  Input/output NCHW (PyTorch convention)."""
    N, C0, H, W = x_nchw.shape
    P = H * W
    NB = images_per_step or _pick_images_per_step(N)
    assert N % NB == 0, "images_per_step must divide the batch"
    G = N // NB
    Q = NB * P

    ou_ch = params[0]["w3"].shape[0] * 2
    # Effective per-layer input-channel counts inside the kernel: layer 0 is
    # padded to the f32 sublane granularity (8); later layers use the real
    # activation width (= ou_ch).
    cin_eff = tuple([_round_up(C0, 8)] + [ou_ch] * (len(params) - 1))
    k_alloc = _round_up(9 * max(cin_eff) + 1, 8)

    # Pad layer-0 channels and pack NB images side-by-side on the lane axis.
    x_flat = x_nchw.reshape(N, C0, P)
    if cin_eff[0] != C0:
        x_flat = jnp.pad(x_flat, ((0, 0), (0, cin_eff[0] - C0), (0, 0)))
    x_packed = (x_flat.reshape(G, NB, cin_eff[0], P)
                .transpose(0, 2, 1, 3)
                .reshape(G, cin_eff[0], Q))

    masks = _make_tap_masks(H, W, NB)                      # (9, Q)
    ws = [_fold_connection(p, cp, k_alloc) for p, cp in zip(params, cin_eff)]

    in_specs = [
        pl.BlockSpec((1, cin_eff[0], Q), lambda n: (n, 0, 0)),
        pl.BlockSpec((9, Q), lambda n: (0, 0)),
    ]
    in_specs += [pl.BlockSpec(w.shape, lambda n: (0, 0)) for w in ws]

    flops = G * sum(2 * w.shape[0] * w.shape[1] * Q for w in ws)
    bytes_accessed = 4 * (x_packed.size + G * ou_ch * Q + masks.size
                          + sum(w.size for w in ws))

    out_packed = pl.pallas_call(
        functools.partial(_conn3_kernel, W=W, cin_eff=cin_eff,
                          k_alloc=k_alloc),
        out_shape=jax.ShapeDtypeStruct((G, ou_ch, Q), x_nchw.dtype),
        grid=(G,),
        in_specs=in_specs,
        out_specs=pl.BlockSpec((1, ou_ch, Q), lambda n: (n, 0, 0)),
        scratch_shapes=[pltpu.VMEM((k_alloc, Q), jnp.float32)],
        compiler_params=pltpu.CompilerParams(
            dimension_semantics=("parallel",)),
        cost_estimate=pl.CostEstimate(flops=flops, transcendentals=0,
                                      bytes_accessed=bytes_accessed),
    )(x_packed, masks, *ws)

    out = (out_packed.reshape(G, ou_ch, NB, P)
           .transpose(0, 2, 1, 3)
           .reshape(N, ou_ch, H, W))
    return out


conn3_forward = jax.jit(conn3_pallas, static_argnames=("images_per_step",))


# ----- parameter init (deterministic synthetic weights, PyTorch layout) -----
def init_connection_params(key, in_ch, ou_ch):
    ch = ou_ch // 2
    k3, kb3, k1, kb1 = jax.random.split(key, 4)
    s3 = 1.0 / np.sqrt(in_ch * 9)
    s1 = 1.0 / np.sqrt(in_ch)
    return {
        "w3": jax.random.uniform(k3, (ch, in_ch, 3, 3), jnp.float32, -s3, s3),
        "b3": jax.random.uniform(kb3, (ch,), jnp.float32, -s3, s3),
        "w1": jax.random.uniform(k1, (ch, in_ch), jnp.float32, -s1, s1),
        "b1": jax.random.uniform(kb1, (ch,), jnp.float32, -s1, s1),
    }


def init_conn3_params(key, in_ch, ou_ch):
    keys = jax.random.split(key, 6)
    params = [init_connection_params(keys[0], in_ch, ou_ch)]
    for i in range(1, 6):
        params.append(init_connection_params(keys[i], ou_ch, ou_ch))
    return params


# ----- pure-JAX reference (lax conv, NCHW) for correctness checking -----
def _connection_ref(x, p):
    dn = lax.conv_dimension_numbers(x.shape, p["w3"].shape,
                                    ("NCHW", "OIHW", "NCHW"))
    y3 = lax.conv_general_dilated(x, p["w3"], (1, 1), "SAME",
                                  dimension_numbers=dn)
    y3 = y3 + p["b3"][None, :, None, None]
    y1 = jnp.einsum("nchw,oc->nohw", x, p["w1"]) + p["b1"][None, :, None, None]
    return jnp.concatenate([y3, y1], axis=1)


def conn3_ref(x, params):
    for p in params:
        x = _connection_ref(x, p)
    return x


if __name__ == "__main__":
    key = jax.random.PRNGKey(0)
    kx, kp, kx2 = jax.random.split(key, 3)

    N, in_ch, ou_ch, H, W = 2, 4, 8, 16, 16
    x = jax.random.normal(kx, (N, in_ch, H, W), jnp.float32)
    params = init_conn3_params(kp, in_ch, ou_ch)

    out = jax.block_until_ready(conn3_forward(x, params))
    assert out.shape == (N, ou_ch, H, W)
    ref = conn3_ref(x, params)
    np.testing.assert_allclose(np.asarray(out), np.asarray(ref),
                               rtol=1e-4, atol=1e-4)

    # Multi-image lane-packing test (NB=2 per grid step): locks in that the
    # boundary masks prevent any bleed between images packed on the lane axis.
    x4 = jax.random.normal(kx2, (4, in_ch, H, W), jnp.float32)
    out4 = jax.block_until_ready(conn3_forward(x4, params))
    ref4 = conn3_ref(x4, params)
    np.testing.assert_allclose(np.asarray(out4), np.asarray(ref4),
                               rtol=1e-4, atol=1e-4)

    print("KERNEL_OK")
</pallas_src>

<mosaic_0001>
module attributes {stable_mosaic.version = 11 : i64} {
  func.func @_conn3_kernel(%arg0: i32, %arg1: memref<1x8x256xf32, #tpu.memory_space<vmem>>, %arg2: memref<9x256xf32, #tpu.memory_space<vmem>>, %arg3: memref<8x80xf32, #tpu.memory_space<vmem>>, %arg4: memref<8x80xf32, #tpu.memory_space<vmem>>, %arg5: memref<8x80xf32, #tpu.memory_space<vmem>>, %arg6: memref<8x80xf32, #tpu.memory_space<vmem>>, %arg7: memref<8x80xf32, #tpu.memory_space<vmem>>, %arg8: memref<8x80xf32, #tpu.memory_space<vmem>>, %arg9: memref<1x8x256xf32, #tpu.memory_space<vmem>>, %arg10: memref<80x256xf32, #tpu.memory_space<vmem>>) attributes {dimension_semantics = [#tpu.dimension_semantics<parallel>], iteration_bounds = array<i64: 2>, scalar_prefetch = 0 : i64, scratch_operands = 1 : i64, tpu.core_type = #tpu.core_type<tc>, window_params = [{transform_indices = @transform_0, window_bounds = array<i64: 1, 8, 256>}, {pipeline_mode = #tpu.pipeline_mode<synchronous>, transform_indices = @transform_1, window_bounds = array<i64: 9, 256>}, {pipeline_mode = #tpu.pipeline_mode<synchronous>, transform_indices = @transform_2, window_bounds = array<i64: 8, 80>}, {pipeline_mode = #tpu.pipeline_mode<synchronous>, transform_indices = @transform_3, window_bounds = array<i64: 8, 80>}, {pipeline_mode = #tpu.pipeline_mode<synchronous>, transform_indices = @transform_4, window_bounds = array<i64: 8, 80>}, {pipeline_mode = #tpu.pipeline_mode<synchronous>, transform_indices = @transform_5, window_bounds = array<i64: 8, 80>}, {pipeline_mode = #tpu.pipeline_mode<synchronous>, transform_indices = @transform_6, window_bounds = array<i64: 8, 80>}, {pipeline_mode = #tpu.pipeline_mode<synchronous>, transform_indices = @transform_7, window_bounds = array<i64: 8, 80>}, {transform_indices = @transform_8, window_bounds = array<i64: 1, 8, 256>}]} {
    %c0 = arith.constant 0 : index
    %c0_0 = arith.constant 0 : index
    %c0_1 = arith.constant 0 : index
    %0 = vector.load %arg1[%c0, %c0_0, %c0_1] : memref<1x8x256xf32, #tpu.memory_space<vmem>>, vector<1x8x256xf32>
    %1 = vector.shape_cast %0 : vector<1x8x256xf32> to vector<8x256xf32>
    %c0_2 = arith.constant 0 : index
    %c0_3 = arith.constant 0 : index
    %2 = vector.load %arg2[%c0_2, %c0_3] : memref<9x256xf32, #tpu.memory_space<vmem>>, vector<9x256xf32>
    %3 = vector.extract_strided_slice %2 {offsets = [0, 0], sizes = [1, 256], strides = [1, 1]} : vector<9x256xf32> to vector<1x256xf32>
    %4 = vector.extract_strided_slice %2 {offsets = [1, 0], sizes = [1, 256], strides = [1, 1]} : vector<9x256xf32> to vector<1x256xf32>
    %5 = vector.extract_strided_slice %2 {offsets = [2, 0], sizes = [1, 256], strides = [1, 1]} : vector<9x256xf32> to vector<1x256xf32>
    %6 = vector.extract_strided_slice %2 {offsets = [3, 0], sizes = [1, 256], strides = [1, 1]} : vector<9x256xf32> to vector<1x256xf32>
    %7 = vector.extract_strided_slice %2 {offsets = [5, 0], sizes = [1, 256], strides = [1, 1]} : vector<9x256xf32> to vector<1x256xf32>
    %8 = vector.extract_strided_slice %2 {offsets = [6, 0], sizes = [1, 256], strides = [1, 1]} : vector<9x256xf32> to vector<1x256xf32>
    %9 = vector.extract_strided_slice %2 {offsets = [7, 0], sizes = [1, 256], strides = [1, 1]} : vector<9x256xf32> to vector<1x256xf32>
    %10 = vector.extract_strided_slice %2 {offsets = [8, 0], sizes = [1, 256], strides = [1, 1]} : vector<9x256xf32> to vector<1x256xf32>
    %c17_i32 = arith.constant 17 : i32
    %11 = tpu.dynamic_rotate %1 by %c17_i32 dim 1 : vector<8x256xf32>, i32 -> vector<8x256xf32>
    %12 = vector.broadcast %3 : vector<1x256xf32> to vector<8x256xf32>
    %13 = arith.mulf %11, %12 : vector<8x256xf32>
    %c0_4 = arith.constant 0 : index
    %c0_5 = arith.constant 0 : index
    %14 = vector.load %arg10[%c0_4, %c0_5] : memref<80x256xf32, #tpu.memory_space<vmem>>, vector<8x256xf32>
    tpu.vector_store %arg10[%c0_4, %c0_5], %13 {strides = array<i32>} : memref<80x256xf32, #tpu.memory_space<vmem>>, vector<8x256xf32>,
    %c16_i32 = arith.constant 16 : i32
    %15 = tpu.dynamic_rotate %1 by %c16_i32 dim 1 : vector<8x256xf32>, i32 -> vector<8x256xf32>
    %16 = vector.broadcast %4 : vector<1x256xf32> to vector<8x256xf32>
    %17 = arith.mulf %15, %16 : vector<8x256xf32>
    %c8 = arith.constant 8 : index
    %c0_6 = arith.constant 0 : index
    %18 = vector.load %arg10[%c8, %c0_6] : memref<80x256xf32, #tpu.memory_space<vmem>>, vector<8x256xf32>
    tpu.vector_store %arg10[%c8, %c0_6], %17 {strides = array<i32>} : memref<80x256xf32, #tpu.memory_space<vmem>>, vector<8x256xf32>,
    %c15_i32 = arith.constant 15 : i32
    %19 = tpu.dynamic_rotate %1 by %c15_i32 dim 1 : vector<8x256xf32>, i32 -> vector<8x256xf32>
    %20 = vector.broadcast %5 : vector<1x256xf32> to vector<8x256xf32>
    %21 = arith.mulf %19, %20 : vector<8x256xf32>
    %c16 = arith.constant 16 : index
    %c0_7 = arith.constant 0 : index
    %22 = vector.load %arg10[%c16, %c0_7] : memref<80x256xf32, #tpu.memory_space<vmem>>, vector<8x256xf32>
    tpu.vector_store %arg10[%c16, %c0_7], %21 {strides = array<i32>} : memref<80x256xf32, #tpu.memory_space<vmem>>, vector<8x256xf32>,
    %c1_i32 = arith.constant 1 : i32
    %23 = tpu.dynamic_rotate %1 by %c1_i32 dim 1 : vector<8x256xf32>, i32 -> vector<8x256xf32>
    %24 = vector.broadcast %6 : vector<1x256xf32> to vector<8x256xf32>
    %25 = arith.mulf %23, %24 : vector<8x256xf32>
    %c24 = arith.constant 24 : index
    %c0_8 = arith.constant 0 : index
    %26 = vector.load %arg10[%c24, %c0_8] : memref<80x256xf32, #tpu.memory_space<vmem>>, vector<8x256xf32>
    tpu.vector_store %arg10[%c24, %c0_8], %25 {strides = array<i32>} : memref<80x256xf32, #tpu.memory_space<vmem>>, vector<8x256xf32>,
    %c32 = arith.constant 32 : index
    %c0_9 = arith.constant 0 : index
    %27 = vector.load %arg10[%c32, %c0_9] : memref<80x256xf32, #tpu.memory_space<vmem>>, vector<8x256xf32>
    tpu.vector_store %arg10[%c32, %c0_9], %1 {strides = array<i32>} : memref<80x256xf32, #tpu.memory_space<vmem>>, vector<8x256xf32>,
    %c255_i32 = arith.constant 255 : i32
    %28 = tpu.dynamic_rotate %1 by %c255_i32 dim 1 : vector<8x256xf32>, i32 -> vector<8x256xf32>
    %29 = vector.broadcast %7 : vector<1x256xf32> to vector<8x256xf32>
    %30 = arith.mulf %28, %29 : vector<8x256xf32>
    %c40 = arith.constant 40 : index
    %c0_10 = arith.constant 0 : index
    %31 = vector.load %arg10[%c40, %c0_10] : memref<80x256xf32, #tpu.memory_space<vmem>>, vector<8x256xf32>
    tpu.vector_store %arg10[%c40, %c0_10], %30 {strides = array<i32>} : memref<80x256xf32, #tpu.memory_space<vmem>>, vector<8x256xf32>,
    %c241_i32 = arith.constant 241 : i32
    %32 = tpu.dynamic_rotate %1 by %c241_i32 dim 1 : vector<8x256xf32>, i32 -> vector<8x256xf32>
    %33 = vector.broadcast %8 : vector<1x256xf32> to vector<8x256xf32>
    %34 = arith.mulf %32, %33 : vector<8x256xf32>
    %c48 = arith.constant 48 : index
    %c0_11 = arith.constant 0 : index
    %35 = vector.load %arg10[%c48, %c0_11] : memref<80x256xf32, #tpu.memory_space<vmem>>, vector<8x256xf32>
    tpu.vector_store %arg10[%c48, %c0_11], %34 {strides = array<i32>} : memref<80x256xf32, #tpu.memory_space<vmem>>, vector<8x256xf32>,
    %c240_i32 = arith.constant 240 : i32
    %36 = tpu.dynamic_rotate %1 by %c240_i32 dim 1 : vector<8x256xf32>, i32 -> vector<8x256xf32>
    %37 = vector.broadcast %9 : vector<1x256xf32> to vector<8x256xf32>
    %38 = arith.mulf %36, %37 : vector<8x256xf32>
    %c56 = arith.constant 56 : index
    %c0_12 = arith.constant 0 : index
    %39 = vector.load %arg10[%c56, %c0_12] : memref<80x256xf32, #tpu.memory_space<vmem>>, vector<8x256xf32>
    tpu.vector_store %arg10[%c56, %c0_12], %38 {strides = array<i32>} : memref<80x256xf32, #tpu.memory_space<vmem>>, vector<8x256xf32>,
    %c239_i32 = arith.constant 239 : i32
    %40 = tpu.dynamic_rotate %1 by %c239_i32 dim 1 : vector<8x256xf32>, i32 -> vector<8x256xf32>
    %41 = vector.broadcast %10 : vector<1x256xf32> to vector<8x256xf32>
    %42 = arith.mulf %40, %41 : vector<8x256xf32>
    %c64 = arith.constant 64 : index
    %c0_13 = arith.constant 0 : index
    %43 = vector.load %arg10[%c64, %c0_13] : memref<80x256xf32, #tpu.memory_space<vmem>>, vector<8x256xf32>
    tpu.vector_store %arg10[%c64, %c0_13], %42 {strides = array<i32>} : memref<80x256xf32, #tpu.memory_space<vmem>>, vector<8x256xf32>,
    %cst = arith.constant 1.000000e+00 : f32
    %44 = vector.broadcast %cst : f32 to vector<8x256xf32>
    %c72 = arith.constant 72 : index
    %c0_14 = arith.constant 0 : index
    %45 = vector.load %arg10[%c72, %c0_14] : memref<80x256xf32, #tpu.memory_space<vmem>>, vector<8x256xf32>
    tpu.vector_store %arg10[%c72, %c0_14], %44 {strides = array<i32>} : memref<80x256xf32, #tpu.memory_space<vmem>>, vector<8x256xf32>,
    %c0_15 = arith.constant 0 : index
    %c0_16 = arith.constant 0 : index
    %46 = vector.load %arg3[%c0_15, %c0_16] : memref<8x80xf32, #tpu.memory_space<vmem>>, vector<8x80xf32>
    %c0_17 = arith.constant 0 : index
    %c0_18 = arith.constant 0 : index
    %47 = vector.load %arg10[%c0_17, %c0_18] : memref<80x256xf32, #tpu.memory_space<vmem>>, vector<80x256xf32>
    %cst_19 = arith.constant dense<0.000000e+00> : vector<8x256xf32>
    %48 = tpu.matmul %46, %47, %cst_19 {dimension_numbers = #tpu.dot_dimension_numbers<[1], [0], [0], [1], [0, 0, 1, 1], [], []>} : vector<8x80xf32>, vector<80x256xf32>, vector<8x256xf32> -> vector<8x256xf32>
    %c17_i32_20 = arith.constant 17 : i32
    %49 = tpu.dynamic_rotate %48 by %c17_i32_20 dim 1 : vector<8x256xf32>, i32 -> vector<8x256xf32>
    %50 = vector.broadcast %3 : vector<1x256xf32> to vector<8x256xf32>
    %51 = arith.mulf %49, %50 : vector<8x256xf32>
    %c0_21 = arith.constant 0 : index
    %c0_22 = arith.constant 0 : index
    %52 = vector.load %arg10[%c0_21, %c0_22] : memref<80x256xf32, #tpu.memory_space<vmem>>, vector<8x256xf32>
    tpu.vector_store %arg10[%c0_21, %c0_22], %51 {strides = array<i32>} : memref<80x256xf32, #tpu.memory_space<vmem>>, vector<8x256xf32>,
    %c16_i32_23 = arith.constant 16 : i32
    %53 = tpu.dynamic_rotate %48 by %c16_i32_23 dim 1 : vector<8x256xf32>, i32 -> vector<8x256xf32>
    %54 = vector.broadcast %4 : vector<1x256xf32> to vector<8x256xf32>
    %55 = arith.mulf %53, %54 : vector<8x256xf32>
    %c8_24 = arith.constant 8 : index
    %c0_25 = arith.constant 0 : index
    %56 = vector.load %arg10[%c8_24, %c0_25] : memref<80x256xf32, #tpu.memory_space<vmem>>, vector<8x256xf32>
    tpu.vector_store %arg10[%c8_24, %c0_25], %55 {strides = array<i32>} : memref<80x256xf32, #tpu.memory_space<vmem>>, vector<8x256xf32>,
    %c15_i32_26 = arith.constant 15 : i32
    %57 = tpu.dynamic_rotate %48 by %c15_i32_26 dim 1 : vector<8x256xf32>, i32 -> vector<8x256xf32>
    %58 = vector.broadcast %5 : vector<1x256xf32> to vector<8x256xf32>
    %59 = arith.mulf %57, %58 : vector<8x256xf32>
    %c16_27 = arith.constant 16 : index
    %c0_28 = arith.constant 0 : index
    %60 = vector.load %arg10[%c16_27, %c0_28] : memref<80x256xf32, #tpu.memory_space<vmem>>, vector<8x256xf32>
    tpu.vector_store %arg10[%c16_27, %c0_28], %59 {strides = array<i32>} : memref<80x256xf32, #tpu.memory_space<vmem>>, vector<8x256xf32>,
    %c1_i32_29 = arith.constant 1 : i32
    %61 = tpu.dynamic_rotate %48 by %c1_i32_29 dim 1 : vector<8x256xf32>, i32 -> vector<8x256xf32>
    %62 = vector.broadcast %6 : vector<1x256xf32> to vector<8x256xf32>
    %63 = arith.mulf %61, %62 : vector<8x256xf32>
    %c24_30 = arith.constant 24 : index
    %c0_31 = arith.constant 0 : index
    %64 = vector.load %arg10[%c24_30, %c0_31] : memref<80x256xf32, #tpu.memory_space<vmem>>, vector<8x256xf32>
    tpu.vector_store %arg10[%c24_30, %c0_31], %63 {strides = array<i32>} : memref<80x256xf32, #tpu.memory_space<vmem>>, vector<8x256xf32>,
    %c32_32 = arith.constant 32 : index
    %c0_33 = arith.constant 0 : index
    %65 = vector.load %arg10[%c32_32, %c0_33] : memref<80x256xf32, #tpu.memory_space<vmem>>, vector<8x256xf32>
    tpu.vector_store %arg10[%c32_32, %c0_33], %48 {strides = array<i32>} : memref<80x256xf32, #tpu.memory_space<vmem>>, vector<8x256xf32>,
    %c255_i32_34 = arith.constant 255 : i32
    %66 = tpu.dynamic_rotate %48 by %c255_i32_34 dim 1 : vector<8x256xf32>, i32 -> vector<8x256xf32>
    %67 = vector.broadcast %7 : vector<1x256xf32> to vector<8x256xf32>
    %68 = arith.mulf %66, %67 : vector<8x256xf32>
    %c40_35 = arith.constant 40 : index
    %c0_36 = arith.constant 0 : index
    %69 = vector.load %arg10[%c40_35, %c0_36] : memref<80x256xf32, #tpu.memory_space<vmem>>, vector<8x256xf32>
    tpu.vector_store %arg10[%c40_35, %c0_36], %68 {strides = array<i32>} : memref<80x256xf32, #tpu.memory_space<vmem>>, vector<8x256xf32>,
    %c241_i32_37 = arith.constant 241 : i32
    %70 = tpu.dynamic_rotate %48 by %c241_i32_37 dim 1 : vector<8x256xf32>, i32 -> vector<8x256xf32>
    %71 = vector.broadcast %8 : vector<1x256xf32> to vector<8x256xf32>
    %72 = arith.mulf %70, %71 : vector<8x256xf32>
    %c48_38 = arith.constant 48 : index
    %c0_39 = arith.constant 0 : index
    %73 = vector.load %arg10[%c48_38, %c0_39] : memref<80x256xf32, #tpu.memory_space<vmem>>, vector<8x256xf32>
    tpu.vector_store %arg10[%c48_38, %c0_39], %72 {strides = array<i32>} : memref<80x256xf32, #tpu.memory_space<vmem>>, vector<8x256xf32>,
    %c240_i32_40 = arith.constant 240 : i32
    %74 = tpu.dynamic_rotate %48 by %c240_i32_40 dim 1 : vector<8x256xf32>, i32 -> vector<8x256xf32>
    %75 = vector.broadcast %9 : vector<1x256xf32> to vector<8x256xf32>
    %76 = arith.mulf %74, %75 : vector<8x256xf32>
    %c56_41 = arith.constant 56 : index
    %c0_42 = arith.constant 0 : index
    %77 = vector.load %arg10[%c56_41, %c0_42] : memref<80x256xf32, #tpu.memory_space<vmem>>, vector<8x256xf32>
    tpu.vector_store %arg10[%c56_41, %c0_42], %76 {strides = array<i32>} : memref<80x256xf32, #tpu.memory_space<vmem>>, vector<8x256xf32>,
    %c239_i32_43 = arith.constant 239 : i32
    %78 = tpu.dynamic_rotate %48 by %c239_i32_43 dim 1 : vector<8x256xf32>, i32 -> vector<8x256xf32>
    %79 = vector.broadcast %10 : vector<1x256xf32> to vector<8x256xf32>
    %80 = arith.mulf %78, %79 : vector<8x256xf32>
    %c64_44 = arith.constant 64 : index
    %c0_45 = arith.constant 0 : index
    %81 = vector.load %arg10[%c64_44, %c0_45] : memref<80x256xf32, #tpu.memory_space<vmem>>, vector<8x256xf32>
    tpu.vector_store %arg10[%c64_44, %c0_45], %80 {strides = array<i32>} : memref<80x256xf32, #tpu.memory_space<vmem>>, vector<8x256xf32>,
    %c0_46 = arith.constant 0 : index
    %c0_47 = arith.constant 0 : index
    %82 = vector.load %arg4[%c0_46, %c0_47] : memref<8x80xf32, #tpu.memory_space<vmem>>, vector<8x80xf32>
    %c0_48 = arith.constant 0 : index
    %c0_49 = arith.constant 0 : index
    %83 = vector.load %arg10[%c0_48, %c0_49] : memref<80x256xf32, #tpu.memory_space<vmem>>, vector<80x256xf32>
    %cst_50 = arith.constant dense<0.000000e+00> : vector<8x256xf32>
    %84 = tpu.matmul %82, %83, %cst_50 {dimension_numbers = #tpu.dot_dimension_numbers<[1], [0], [0], [1], [0, 0, 1, 1], [], []>} : vector<8x80xf32>, vector<80x256xf32>, vector<8x256xf32> -> vector<8x256xf32>
    %c17_i32_51 = arith.constant 17 : i32
    %85 = tpu.dynamic_rotate %84 by %c17_i32_51 dim 1 : vector<8x256xf32>, i32 -> vector<8x256xf32>
    %86 = vector.broadcast %3 : vector<1x256xf32> to vector<8x256xf32>
    %87 = arith.mulf %85, %86 : vector<8x256xf32>
    %c0_52 = arith.constant 0 : index
    %c0_53 = arith.constant 0 : index
    %88 = vector.load %arg10[%c0_52, %c0_53] : memref<80x256xf32, #tpu.memory_space<vmem>>, vector<8x256xf32>
    tpu.vector_store %arg10[%c0_52, %c0_53], %87 {strides = array<i32>} : memref<80x256xf32, #tpu.memory_space<vmem>>, vector<8x256xf32>,
    %c16_i32_54 = arith.constant 16 : i32
    %89 = tpu.dynamic_rotate %84 by %c16_i32_54 dim 1 : vector<8x256xf32>, i32 -> vector<8x256xf32>
    %90 = vector.broadcast %4 : vector<1x256xf32> to vector<8x256xf32>
    %91 = arith.mulf %89, %90 : vector<8x256xf32>
    %c8_55 = arith.constant 8 : index
    %c0_56 = arith.constant 0 : index
    %92 = vector.load %arg10[%c8_55, %c0_56] : memref<80x256xf32, #tpu.memory_space<vmem>>, vector<8x256xf32>
    tpu.vector_store %arg10[%c8_55, %c0_56], %91 {strides = array<i32>} : memref<80x256xf32, #tpu.memory_space<vmem>>, vector<8x256xf32>,
    %c15_i32_57 = arith.constant 15 : i32
    %93 = tpu.dynamic_rotate %84 by %c15_i32_57 dim 1 : vector<8x256xf32>, i32 -> vector<8x256xf32>
    %94 = vector.broadcast %5 : vector<1x256xf32> to vector<8x256xf32>
    %95 = arith.mulf %93, %94 : vector<8x256xf32>
    %c16_58 = arith.constant 16 : index
    %c0_59 = arith.constant 0 : index
    %96 = vector.load %arg10[%c16_58, %c0_59] : memref<80x256xf32, #tpu.memory_space<vmem>>, vector<8x256xf32>
    tpu.vector_store %arg10[%c16_58, %c0_59], %95 {strides = array<i32>} : memref<80x256xf32, #tpu.memory_space<vmem>>, vector<8x256xf32>,
    %c1_i32_60 = arith.constant 1 : i32
    %97 = tpu.dynamic_rotate %84 by %c1_i32_60 dim 1 : vector<8x256xf32>, i32 -> vector<8x256xf32>
    %98 = vector.broadcast %6 : vector<1x256xf32> to vector<8x256xf32>
    %99 = arith.mulf %97, %98 : vector<8x256xf32>
    %c24_61 = arith.constant 24 : index
    %c0_62 = arith.constant 0 : index
    %100 = vector.load %arg10[%c24_61, %c0_62] : memref<80x256xf32, #tpu.memory_space<vmem>>, vector<8x256xf32>
    tpu.vector_store %arg10[%c24_61, %c0_62], %99 {strides = array<i32>} : memref<80x256xf32, #tpu.memory_space<vmem>>, vector<8x256xf32>,
    %c32_63 = arith.constant 32 : index
    %c0_64 = arith.constant 0 : index
    %101 = vector.load %arg10[%c32_63, %c0_64] : memref<80x256xf32, #tpu.memory_space<vmem>>, vector<8x256xf32>
    tpu.vector_store %arg10[%c32_63, %c0_64], %84 {strides = array<i32>} : memref<80x256xf32, #tpu.memory_space<vmem>>, vector<8x256xf32>,
    %c255_i32_65 = arith.constant 255 : i32
    %102 = tpu.dynamic_rotate %84 by %c255_i32_65 dim 1 : vector<8x256xf32>, i32 -> vector<8x256xf32>
    %103 = vector.broadcast %7 : vector<1x256xf32> to vector<8x256xf32>
    %104 = arith.mulf %102, %103 : vector<8x256xf32>
    %c40_66 = arith.constant 40 : index
    %c0_67 = arith.constant 0 : index
    %105 = vector.load %arg10[%c40_66, %c0_67] : memref<80x256xf32, #tpu.memory_space<vmem>>, vector<8x256xf32>
    tpu.vector_store %arg10[%c40_66, %c0_67], %104 {strides = array<i32>} : memref<80x256xf32, #tpu.memory_space<vmem>>, vector<8x256xf32>,
    %c241_i32_68 = arith.constant 241 : i32
    %106 = tpu.dynamic_rotate %84 by %c241_i32_68 dim 1 : vector<8x256xf32>, i32 -> vector<8x256xf32>
    %107 = vector.broadcast %8 : vector<1x256xf32> to vector<8x256xf32>
    %108 = arith.mulf %106, %107 : vector<8x256xf32>
    %c48_69 = arith.constant 48 : index
    %c0_70 = arith.constant 0 : index
    %109 = vector.load %arg10[%c48_69, %c0_70] : memref<80x256xf32, #tpu.memory_space<vmem>>, vector<8x256xf32>
    tpu.vector_store %arg10[%c48_69, %c0_70], %108 {strides = array<i32>} : memref<80x256xf32, #tpu.memory_space<vmem>>, vector<8x256xf32>,
    %c240_i32_71 = arith.constant 240 : i32
    %110 = tpu.dynamic_rotate %84 by %c240_i32_71 dim 1 : vector<8x256xf32>, i32 -> vector<8x256xf32>
    %111 = vector.broadcast %9 : vector<1x256xf32> to vector<8x256xf32>
    %112 = arith.mulf %110, %111 : vector<8x256xf32>
    %c56_72 = arith.constant 56 : index
    %c0_73 = arith.constant 0 : index
    %113 = vector.load %arg10[%c56_72, %c0_73] : memref<80x256xf32, #tpu.memory_space<vmem>>, vector<8x256xf32>
    tpu.vector_store %arg10[%c56_72, %c0_73], %112 {strides = array<i32>} : memref<80x256xf32, #tpu.memory_space<vmem>>, vector<8x256xf32>,
    %c239_i32_74 = arith.constant 239 : i32
    %114 = tpu.dynamic_rotate %84 by %c239_i32_74 dim 1 : vector<8x256xf32>, i32 -> vector<8x256xf32>
    %115 = vector.broadcast %10 : vector<1x256xf32> to vector<8x256xf32>
    %116 = arith.mulf %114, %115 : vector<8x256xf32>
    %c64_75 = arith.constant 64 : index
    %c0_76 = arith.constant 0 : index
    %117 = vector.load %arg10[%c64_75, %c0_76] : memref<80x256xf32, #tpu.memory_space<vmem>>, vector<8x256xf32>
    tpu.vector_store %arg10[%c64_75, %c0_76], %116 {strides = array<i32>} : memref<80x256xf32, #tpu.memory_space<vmem>>, vector<8x256xf32>,
    %c0_77 = arith.constant 0 : index
    %c0_78 = arith.constant 0 : index
    %118 = vector.load %arg5[%c0_77, %c0_78] : memref<8x80xf32, #tpu.memory_space<vmem>>, vector<8x80xf32>
    %c0_79 = arith.constant 0 : index
    %c0_80 = arith.constant 0 : index
    %119 = vector.load %arg10[%c0_79, %c0_80] : memref<80x256xf32, #tpu.memory_space<vmem>>, vector<80x256xf32>
    %cst_81 = arith.constant dense<0.000000e+00> : vector<8x256xf32>
    %120 = tpu.matmul %118, %119, %cst_81 {dimension_numbers = #tpu.dot_dimension_numbers<[1], [0], [0], [1], [0, 0, 1, 1], [], []>} : vector<8x80xf32>, vector<80x256xf32>, vector<8x256xf32> -> vector<8x256xf32>
    %c17_i32_82 = arith.constant 17 : i32
    %121 = tpu.dynamic_rotate %120 by %c17_i32_82 dim 1 : vector<8x256xf32>, i32 -> vector<8x256xf32>
    %122 = vector.broadcast %3 : vector<1x256xf32> to vector<8x256xf32>
    %123 = arith.mulf %121, %122 : vector<8x256xf32>
    %c0_83 = arith.constant 0 : index
    %c0_84 = arith.constant 0 : index
    %124 = vector.load %arg10[%c0_83, %c0_84] : memref<80x256xf32, #tpu.memory_space<vmem>>, vector<8x256xf32>
    tpu.vector_store %arg10[%c0_83, %c0_84], %123 {strides = array<i32>} : memref<80x256xf32, #tpu.memory_space<vmem>>, vector<8x256xf32>,
    %c16_i32_85 = arith.constant 16 : i32
    %125 = tpu.dynamic_rotate %120 by %c16_i32_85 dim 1 : vector<8x256xf32>, i32 -> vector<8x256xf32>
    %126 = vector.broadcast %4 : vector<1x256xf32> to vector<8x256xf32>
    %127 = arith.mulf %125, %126 : vector<8x256xf32>
    %c8_86 = arith.constant 8 : index
    %c0_87 = arith.constant 0 : index
    %128 = vector.load %arg10[%c8_86, %c0_87] : memref<80x256xf32, #tpu.memory_space<vmem>>, vector<8x256xf32>
    tpu.vector_store %arg10[%c8_86, %c0_87], %127 {strides = array<i32>} : memref<80x256xf32, #tpu.memory_space<vmem>>, vector<8x256xf32>,
    %c15_i32_88 = arith.constant 15 : i32
    %129 = tpu.dynamic_rotate %120 by %c15_i32_88 dim 1 : vector<8x256xf32>, i32 -> vector<8x256xf32>
    %130 = vector.broadcast %5 : vector<1x256xf32> to vector<8x256xf32>
    %131 = arith.mulf %129, %130 : vector<8x256xf32>
    %c16_89 = arith.constant 16 : index
    %c0_90 = arith.constant 0 : index
    %132 = vector.load %arg10[%c16_89, %c0_90] : memref<80x256xf32, #tpu.memory_space<vmem>>, vector<8x256xf32>
    tpu.vector_store %arg10[%c16_89, %c0_90], %131 {strides = array<i32>} : memref<80x256xf32, #tpu.memory_space<vmem>>, vector<8x256xf32>,
    %c1_i32_91 = arith.constant 1 : i32
    %133 = tpu.dynamic_rotate %120 by %c1_i32_91 dim 1 : vector<8x256xf32>, i32 -> vector<8x256xf32>
    %134 = vector.broadcast %6 : vector<1x256xf32> to vector<8x256xf32>
    %135 = arith.mulf %133, %134 : vector<8x256xf32>
    %c24_92 = arith.constant 24 : index
    %c0_93 = arith.constant 0 : index
    %136 = vector.load %arg10[%c24_92, %c0_93] : memref<80x256xf32, #tpu.memory_space<vmem>>, vector<8x256xf32>
    tpu.vector_store %arg10[%c24_92, %c0_93], %135 {strides = array<i32>} : memref<80x256xf32, #tpu.memory_space<vmem>>, vector<8x256xf32>,
    %c32_94 = arith.constant 32 : index
    %c0_95 = arith.constant 0 : index
    %137 = vector.load %arg10[%c32_94, %c0_95] : memref<80x256xf32, #tpu.memory_space<vmem>>, vector<8x256xf32>
    tpu.vector_store %arg10[%c32_94, %c0_95], %120 {strides = array<i32>} : memref<80x256xf32, #tpu.memory_space<vmem>>, vector<8x256xf32>,
    %c255_i32_96 = arith.constant 255 : i32
    %138 = tpu.dynamic_rotate %120 by %c255_i32_96 dim 1 : vector<8x256xf32>, i32 -> vector<8x256xf32>
    %139 = vector.broadcast %7 : vector<1x256xf32> to vector<8x256xf32>
    %140 = arith.mulf %138, %139 : vector<8x256xf32>
    %c40_97 = arith.constant 40 : index
    %c0_98 = arith.constant 0 : index
    %141 = vector.load %arg10[%c40_97, %c0_98] : memref<80x256xf32, #tpu.memory_space<vmem>>, vector<8x256xf32>
    tpu.vector_store %arg10[%c40_97, %c0_98], %140 {strides = array<i32>} : memref<80x256xf32, #tpu.memory_space<vmem>>, vector<8x256xf32>,
    %c241_i32_99 = arith.constant 241 : i32
    %142 = tpu.dynamic_rotate %120 by %c241_i32_99 dim 1 : vector<8x256xf32>, i32 -> vector<8x256xf32>
    %143 = vector.broadcast %8 : vector<1x256xf32> to vector<8x256xf32>
    %144 = arith.mulf %142, %143 : vector<8x256xf32>
    %c48_100 = arith.constant 48 : index
    %c0_101 = arith.constant 0 : index
    %145 = vector.load %arg10[%c48_100, %c0_101] : memref<80x256xf32, #tpu.memory_space<vmem>>, vector<8x256xf32>
    tpu.vector_store %arg10[%c48_100, %c0_101], %144 {strides = array<i32>} : memref<80x256xf32, #tpu.memory_space<vmem>>, vector<8x256xf32>,
    %c240_i32_102 = arith.constant 240 : i32
    %146 = tpu.dynamic_rotate %120 by %c240_i32_102 dim 1 : vector<8x256xf32>, i32 -> vector<8x256xf32>
    %147 = vector.broadcast %9 : vector<1x256xf32> to vector<8x256xf32>
    %148 = arith.mulf %146, %147 : vector<8x256xf32>
    %c56_103 = arith.constant 56 : index
    %c0_104 = arith.constant 0 : index
    %149 = vector.load %arg10[%c56_103, %c0_104] : memref<80x256xf32, #tpu.memory_space<vmem>>, vector<8x256xf32>
    tpu.vector_store %arg10[%c56_103, %c0_104], %148 {strides = array<i32>} : memref<80x256xf32, #tpu.memory_space<vmem>>, vector<8x256xf32>,
    %c239_i32_105 = arith.constant 239 : i32
    %150 = tpu.dynamic_rotate %120 by %c239_i32_105 dim 1 : vector<8x256xf32>, i32 -> vector<8x256xf32>
    %151 = vector.broadcast %10 : vector<1x256xf32> to vector<8x256xf32>
    %152 = arith.mulf %150, %151 : vector<8x256xf32>
    %c64_106 = arith.constant 64 : index
    %c0_107 = arith.constant 0 : index
    %153 = vector.load %arg10[%c64_106, %c0_107] : memref<80x256xf32, #tpu.memory_space<vmem>>, vector<8x256xf32>
    tpu.vector_store %arg10[%c64_106, %c0_107], %152 {strides = array<i32>} : memref<80x256xf32, #tpu.memory_space<vmem>>, vector<8x256xf32>,
    %c0_108 = arith.constant 0 : index
    %c0_109 = arith.constant 0 : index
    %154 = vector.load %arg6[%c0_108, %c0_109] : memref<8x80xf32, #tpu.memory_space<vmem>>, vector<8x80xf32>
    %c0_110 = arith.constant 0 : index
    %c0_111 = arith.constant 0 : index
    %155 = vector.load %arg10[%c0_110, %c0_111] : memref<80x256xf32, #tpu.memory_space<vmem>>, vector<80x256xf32>
    %cst_112 = arith.constant dense<0.000000e+00> : vector<8x256xf32>
    %156 = tpu.matmul %154, %155, %cst_112 {dimension_numbers = #tpu.dot_dimension_numbers<[1], [0], [0], [1], [0, 0, 1, 1], [], []>} : vector<8x80xf32>, vector<80x256xf32>, vector<8x256xf32> -> vector<8x256xf32>
    %c17_i32_113 = arith.constant 17 : i32
    %157 = tpu.dynamic_rotate %156 by %c17_i32_113 dim 1 : vector<8x256xf32>, i32 -> vector<8x256xf32>
    %158 = vector.broadcast %3 : vector<1x256xf32> to vector<8x256xf32>
    %159 = arith.mulf %157, %158 : vector<8x256xf32>
    %c0_114 = arith.constant 0 : index
    %c0_115 = arith.constant 0 : index
    %160 = vector.load %arg10[%c0_114, %c0_115] : memref<80x256xf32, #tpu.memory_space<vmem>>, vector<8x256xf32>
    tpu.vector_store %arg10[%c0_114, %c0_115], %159 {strides = array<i32>} : memref<80x256xf32, #tpu.memory_space<vmem>>, vector<8x256xf32>,
    %c16_i32_116 = arith.constant 16 : i32
    %161 = tpu.dynamic_rotate %156 by %c16_i32_116 dim 1 : vector<8x256xf32>, i32 -> vector<8x256xf32>
    %162 = vector.broadcast %4 : vector<1x256xf32> to vector<8x256xf32>
    %163 = arith.mulf %161, %162 : vector<8x256xf32>
    %c8_117 = arith.constant 8 : index
    %c0_118 = arith.constant 0 : index
    %164 = vector.load %arg10[%c8_117, %c0_118] : memref<80x256xf32, #tpu.memory_space<vmem>>, vector<8x256xf32>
    tpu.vector_store %arg10[%c8_117, %c0_118], %163 {strides = array<i32>} : memref<80x256xf32, #tpu.memory_space<vmem>>, vector<8x256xf32>,
    %c15_i32_119 = arith.constant 15 : i32
    %165 = tpu.dynamic_rotate %156 by %c15_i32_119 dim 1 : vector<8x256xf32>, i32 -> vector<8x256xf32>
    %166 = vector.broadcast %5 : vector<1x256xf32> to vector<8x256xf32>
    %167 = arith.mulf %165, %166 : vector<8x256xf32>
    %c16_120 = arith.constant 16 : index
    %c0_121 = arith.constant 0 : index
    %168 = vector.load %arg10[%c16_120, %c0_121] : memref<80x256xf32, #tpu.memory_space<vmem>>, vector<8x256xf32>
    tpu.vector_store %arg10[%c16_120, %c0_121], %167 {strides = array<i32>} : memref<80x256xf32, #tpu.memory_space<vmem>>, vector<8x256xf32>,
    %c1_i32_122 = arith.constant 1 : i32
    %169 = tpu.dynamic_rotate %156 by %c1_i32_122 dim 1 : vector<8x256xf32>, i32 -> vector<8x256xf32>
    %170 = vector.broadcast %6 : vector<1x256xf32> to vector<8x256xf32>
    %171 = arith.mulf %169, %170 : vector<8x256xf32>
    %c24_123 = arith.constant 24 : index
    %c0_124 = arith.constant 0 : index
    %172 = vector.load %arg10[%c24_123, %c0_124] : memref<80x256xf32, #tpu.memory_space<vmem>>, vector<8x256xf32>
    tpu.vector_store %arg10[%c24_123, %c0_124], %171 {strides = array<i32>} : memref<80x256xf32, #tpu.memory_space<vmem>>, vector<8x256xf32>,
    %c32_125 = arith.constant 32 : index
    %c0_126 = arith.constant 0 : index
    %173 = vector.load %arg10[%c32_125, %c0_126] : memref<80x256xf32, #tpu.memory_space<vmem>>, vector<8x256xf32>
    tpu.vector_store %arg10[%c32_125, %c0_126], %156 {strides = array<i32>} : memref<80x256xf32, #tpu.memory_space<vmem>>, vector<8x256xf32>,
    %c255_i32_127 = arith.constant 255 : i32
    %174 = tpu.dynamic_rotate %156 by %c255_i32_127 dim 1 : vector<8x256xf32>, i32 -> vector<8x256xf32>
    %175 = vector.broadcast %7 : vector<1x256xf32> to vector<8x256xf32>
    %176 = arith.mulf %174, %175 : vector<8x256xf32>
    %c40_128 = arith.constant 40 : index
    %c0_129 = arith.constant 0 : index
    %177 = vector.load %arg10[%c40_128, %c0_129] : memref<80x256xf32, #tpu.memory_space<vmem>>, vector<8x256xf32>
    tpu.vector_store %arg10[%c40_128, %c0_129], %176 {strides = array<i32>} : memref<80x256xf32, #tpu.memory_space<vmem>>, vector<8x256xf32>,
    %c241_i32_130 = arith.constant 241 : i32
    %178 = tpu.dynamic_rotate %156 by %c241_i32_130 dim 1 : vector<8x256xf32>, i32 -> vector<8x256xf32>
    %179 = vector.broadcast %8 : vector<1x256xf32> to vector<8x256xf32>
    %180 = arith.mulf %178, %179 : vector<8x256xf32>
    %c48_131 = arith.constant 48 : index
    %c0_132 = arith.constant 0 : index
    %181 = vector.load %arg10[%c48_131, %c0_132] : memref<80x256xf32, #tpu.memory_space<vmem>>, vector<8x256xf32>
    tpu.vector_store %arg10[%c48_131, %c0_132], %180 {strides = array<i32>} : memref<80x256xf32, #tpu.memory_space<vmem>>, vector<8x256xf32>,
    %c240_i32_133 = arith.constant 240 : i32
    %182 = tpu.dynamic_rotate %156 by %c240_i32_133 dim 1 : vector<8x256xf32>, i32 -> vector<8x256xf32>
    %183 = vector.broadcast %9 : vector<1x256xf32> to vector<8x256xf32>
    %184 = arith.mulf %182, %183 : vector<8x256xf32>
    %c56_134 = arith.constant 56 : index
    %c0_135 = arith.constant 0 : index
    %185 = vector.load %arg10[%c56_134, %c0_135] : memref<80x256xf32, #tpu.memory_space<vmem>>, vector<8x256xf32>
    tpu.vector_store %arg10[%c56_134, %c0_135], %184 {strides = array<i32>} : memref<80x256xf32, #tpu.memory_space<vmem>>, vector<8x256xf32>,
    %c239_i32_136 = arith.constant 239 : i32
    %186 = tpu.dynamic_rotate %156 by %c239_i32_136 dim 1 : vector<8x256xf32>, i32 -> vector<8x256xf32>
    %187 = vector.broadcast %10 : vector<1x256xf32> to vector<8x256xf32>
    %188 = arith.mulf %186, %187 : vector<8x256xf32>
    %c64_137 = arith.constant 64 : index
    %c0_138 = arith.constant 0 : index
    %189 = vector.load %arg10[%c64_137, %c0_138] : memref<80x256xf32, #tpu.memory_space<vmem>>, vector<8x256xf32>
    tpu.vector_store %arg10[%c64_137, %c0_138], %188 {strides = array<i32>} : memref<80x256xf32, #tpu.memory_space<vmem>>, vector<8x256xf32>,
    %c0_139 = arith.constant 0 : index
    %c0_140 = arith.constant 0 : index
    %190 = vector.load %arg7[%c0_139, %c0_140] : memref<8x80xf32, #tpu.memory_space<vmem>>, vector<8x80xf32>
    %c0_141 = arith.constant 0 : index
    %c0_142 = arith.constant 0 : index
    %191 = vector.load %arg10[%c0_141, %c0_142] : memref<80x256xf32, #tpu.memory_space<vmem>>, vector<80x256xf32>
    %cst_143 = arith.constant dense<0.000000e+00> : vector<8x256xf32>
    %192 = tpu.matmul %190, %191, %cst_143 {dimension_numbers = #tpu.dot_dimension_numbers<[1], [0], [0], [1], [0, 0, 1, 1], [], []>} : vector<8x80xf32>, vector<80x256xf32>, vector<8x256xf32> -> vector<8x256xf32>
    %c17_i32_144 = arith.constant 17 : i32
    %193 = tpu.dynamic_rotate %192 by %c17_i32_144 dim 1 : vector<8x256xf32>, i32 -> vector<8x256xf32>
    %194 = vector.broadcast %3 : vector<1x256xf32> to vector<8x256xf32>
    %195 = arith.mulf %193, %194 : vector<8x256xf32>
    %c0_145 = arith.constant 0 : index
    %c0_146 = arith.constant 0 : index
    %196 = vector.load %arg10[%c0_145, %c0_146] : memref<80x256xf32, #tpu.memory_space<vmem>>, vector<8x256xf32>
    tpu.vector_store %arg10[%c0_145, %c0_146], %195 {strides = array<i32>} : memref<80x256xf32, #tpu.memory_space<vmem>>, vector<8x256xf32>,
    %c16_i32_147 = arith.constant 16 : i32
    %197 = tpu.dynamic_rotate %192 by %c16_i32_147 dim 1 : vector<8x256xf32>, i32 -> vector<8x256xf32>
    %198 = vector.broadcast %4 : vector<1x256xf32> to vector<8x256xf32>
    %199 = arith.mulf %197, %198 : vector<8x256xf32>
    %c8_148 = arith.constant 8 : index
    %c0_149 = arith.constant 0 : index
    %200 = vector.load %arg10[%c8_148, %c0_149] : memref<80x256xf32, #tpu.memory_space<vmem>>, vector<8x256xf32>
    tpu.vector_store %arg10[%c8_148, %c0_149], %199 {strides = array<i32>} : memref<80x256xf32, #tpu.memory_space<vmem>>, vector<8x256xf32>,
    %c15_i32_150 = arith.constant 15 : i32
    %201 = tpu.dynamic_rotate %192 by %c15_i32_150 dim 1 : vector<8x256xf32>, i32 -> vector<8x256xf32>
    %202 = vector.broadcast %5 : vector<1x256xf32> to vector<8x256xf32>
    %203 = arith.mulf %201, %202 : vector<8x256xf32>
    %c16_151 = arith.constant 16 : index
    %c0_152 = arith.constant 0 : index
    %204 = vector.load %arg10[%c16_151, %c0_152] : memref<80x256xf32, #tpu.memory_space<vmem>>, vector<8x256xf32>
    tpu.vector_store %arg10[%c16_151, %c0_152], %203 {strides = array<i32>} : memref<80x256xf32, #tpu.memory_space<vmem>>, vector<8x256xf32>,
    %c1_i32_153 = arith.constant 1 : i32
    %205 = tpu.dynamic_rotate %192 by %c1_i32_153 dim 1 : vector<8x256xf32>, i32 -> vector<8x256xf32>
    %206 = vector.broadcast %6 : vector<1x256xf32> to vector<8x256xf32>
    %207 = arith.mulf %205, %206 : vector<8x256xf32>
    %c24_154 = arith.constant 24 : index
    %c0_155 = arith.constant 0 : index
    %208 = vector.load %arg10[%c24_154, %c0_155] : memref<80x256xf32, #tpu.memory_space<vmem>>, vector<8x256xf32>
    tpu.vector_store %arg10[%c24_154, %c0_155], %207 {strides = array<i32>} : memref<80x256xf32, #tpu.memory_space<vmem>>, vector<8x256xf32>,
    %c32_156 = arith.constant 32 : index
    %c0_157 = arith.constant 0 : index
    %209 = vector.load %arg10[%c32_156, %c0_157] : memref<80x256xf32, #tpu.memory_space<vmem>>, vector<8x256xf32>
    tpu.vector_store %arg10[%c32_156, %c0_157], %192 {strides = array<i32>} : memref<80x256xf32, #tpu.memory_space<vmem>>, vector<8x256xf32>,
    %c255_i32_158 = arith.constant 255 : i32
    %210 = tpu.dynamic_rotate %192 by %c255_i32_158 dim 1 : vector<8x256xf32>, i32 -> vector<8x256xf32>
    %211 = vector.broadcast %7 : vector<1x256xf32> to vector<8x256xf32>
    %212 = arith.mulf %210, %211 : vector<8x256xf32>
    %c40_159 = arith.constant 40 : index
    %c0_160 = arith.constant 0 : index
    %213 = vector.load %arg10[%c40_159, %c0_160] : memref<80x256xf32, #tpu.memory_space<vmem>>, vector<8x256xf32>
    tpu.vector_store %arg10[%c40_159, %c0_160], %212 {strides = array<i32>} : memref<80x256xf32, #tpu.memory_space<vmem>>, vector<8x256xf32>,
    %c241_i32_161 = arith.constant 241 : i32
    %214 = tpu.dynamic_rotate %192 by %c241_i32_161 dim 1 : vector<8x256xf32>, i32 -> vector<8x256xf32>
    %215 = vector.broadcast %8 : vector<1x256xf32> to vector<8x256xf32>
    %216 = arith.mulf %214, %215 : vector<8x256xf32>
    %c48_162 = arith.constant 48 : index
    %c0_163 = arith.constant 0 : index
    %217 = vector.load %arg10[%c48_162, %c0_163] : memref<80x256xf32, #tpu.memory_space<vmem>>, vector<8x256xf32>
    tpu.vector_store %arg10[%c48_162, %c0_163], %216 {strides = array<i32>} : memref<80x256xf32, #tpu.memory_space<vmem>>, vector<8x256xf32>,
    %c240_i32_164 = arith.constant 240 : i32
    %218 = tpu.dynamic_rotate %192 by %c240_i32_164 dim 1 : vector<8x256xf32>, i32 -> vector<8x256xf32>
    %219 = vector.broadcast %9 : vector<1x256xf32> to vector<8x256xf32>
    %220 = arith.mulf %218, %219 : vector<8x256xf32>
    %c56_165 = arith.constant 56 : index
    %c0_166 = arith.constant 0 : index
    %221 = vector.load %arg10[%c56_165, %c0_166] : memref<80x256xf32, #tpu.memory_space<vmem>>, vector<8x256xf32>
    tpu.vector_store %arg10[%c56_165, %c0_166], %220 {strides = array<i32>} : memref<80x256xf32, #tpu.memory_space<vmem>>, vector<8x256xf32>,
    %c239_i32_167 = arith.constant 239 : i32
    %222 = tpu.dynamic_rotate %192 by %c239_i32_167 dim 1 : vector<8x256xf32>, i32 -> vector<8x256xf32>
    %223 = vector.broadcast %10 : vector<1x256xf32> to vector<8x256xf32>
    %224 = arith.mulf %222, %223 : vector<8x256xf32>
    %c64_168 = arith.constant 64 : index
    %c0_169 = arith.constant 0 : index
    %225 = vector.load %arg10[%c64_168, %c0_169] : memref<80x256xf32, #tpu.memory_space<vmem>>, vector<8x256xf32>
    tpu.vector_store %arg10[%c64_168, %c0_169], %224 {strides = array<i32>} : memref<80x256xf32, #tpu.memory_space<vmem>>, vector<8x256xf32>,
    %c0_170 = arith.constant 0 : index
    %c0_171 = arith.constant 0 : index
    %226 = vector.load %arg8[%c0_170, %c0_171] : memref<8x80xf32, #tpu.memory_space<vmem>>, vector<8x80xf32>
    %c0_172 = arith.constant 0 : index
    %c0_173 = arith.constant 0 : index
    %227 = vector.load %arg10[%c0_172, %c0_173] : memref<80x256xf32, #tpu.memory_space<vmem>>, vector<80x256xf32>
    %cst_174 = arith.constant dense<0.000000e+00> : vector<8x256xf32>
    %228 = tpu.matmul %226, %227, %cst_174 {dimension_numbers = #tpu.dot_dimension_numbers<[1], [0], [0], [1], [0, 0, 1, 1], [], []>} : vector<8x80xf32>, vector<80x256xf32>, vector<8x256xf32> -> vector<8x256xf32>
    %c0_175 = arith.constant 0 : index
    %c0_176 = arith.constant 0 : index
    %c0_177 = arith.constant 0 : index
    %229 = vector.load %arg9[%c0_175, %c0_176, %c0_177] : memref<1x8x256xf32, #tpu.memory_space<vmem>>, vector<1x8x256xf32>
    %230 = vector.shape_cast %229 : vector<1x8x256xf32> to vector<8x256xf32>
    %231 = vector.shape_cast %228 : vector<8x256xf32> to vector<1x8x256xf32>
    tpu.vector_store %arg9[%c0_175, %c0_176, %c0_177], %231 {strides = array<i32>} : memref<1x8x256xf32, #tpu.memory_space<vmem>>, vector<1x8x256xf32>,
    return
  }
  func.func @transform_0(%arg0: i32) -> (i32, i32, i32) {
    %c0_i32 = arith.constant 0 : i32
    %c0_i32_0 = arith.constant 0 : i32
    %c0_i32_1 = arith.constant 0 : i32
    return %arg0, %c0_i32, %c0_i32_0 : i32, i32, i32
  }
  func.func @transform_1(%arg0: i32) -> (i32, i32) {
    %c0_i32 = arith.constant 0 : i32
    %c0_i32_0 = arith.constant 0 : i32
    %c0_i32_1 = arith.constant 0 : i32
    return %c0_i32, %c0_i32_0 : i32, i32
  }
  func.func @transform_2(%arg0: i32) -> (i32, i32) {
    %c0_i32 = arith.constant 0 : i32
    %c0_i32_0 = arith.constant 0 : i32
    %c0_i32_1 = arith.constant 0 : i32
    return %c0_i32, %c0_i32_0 : i32, i32
  }
  func.func @transform_3(%arg0: i32) -> (i32, i32) {
    %c0_i32 = arith.constant 0 : i32
    %c0_i32_0 = arith.constant 0 : i32
    %c0_i32_1 = arith.constant 0 : i32
    return %c0_i32, %c0_i32_0 : i32, i32
  }
  func.func @transform_4(%arg0: i32) -> (i32, i32) {
    %c0_i32 = arith.constant 0 : i32
    %c0_i32_0 = arith.constant 0 : i32
    %c0_i32_1 = arith.constant 0 : i32
    return %c0_i32, %c0_i32_0 : i32, i32
  }
  func.func @transform_5(%arg0: i32) -> (i32, i32) {
    %c0_i32 = arith.constant 0 : i32
    %c0_i32_0 = arith.constant 0 : i32
    %c0_i32_1 = arith.constant 0 : i32
    return %c0_i32, %c0_i32_0 : i32, i32
  }
  func.func @transform_6(%arg0: i32) -> (i32, i32) {
    %c0_i32 = arith.constant 0 : i32
    %c0_i32_0 = arith.constant 0 : i32
    %c0_i32_1 = arith.constant 0 : i32
    return %c0_i32, %c0_i32_0 : i32, i32
  }
  func.func @transform_7(%arg0: i32) -> (i32, i32) {
    %c0_i32 = arith.constant 0 : i32
    %c0_i32_0 = arith.constant 0 : i32
    %c0_i32_1 = arith.constant 0 : i32
    return %c0_i32, %c0_i32_0 : i32, i32
  }
  func.func @transform_8(%arg0: i32) -> (i32, i32, i32) {
    %c0_i32 = arith.constant 0 : i32
    %c0_i32_0 = arith.constant 0 : i32
    %c0_i32_1 = arith.constant 0 : i32
    return %arg0, %c0_i32, %c0_i32_0 : i32, i32, i32
  }
}

</mosaic_0001>

<llo_original>
// kernel: conn3_pallas.1
$region0: #{conn3_pallas.1}
  #allocation0 [shape = 'u32[]', space=smem, size = 0x4, offset = 0x4, fixed_abs, tag = 'smem constant byte address 0x4 - core index']
  #allocation1 [shape = 'u32[144,128]{1,0:T(1,128)}', space=vmem, size = 0x12000, scoped, tag = 'internal scratch']
  #allocation2 [shape = 'f32[80,256]{1,0:T(8,128)}', space=vmem, size = 0x14000, scoped, tag = 'scratch operand']
  %s0 = inlined_call_operand.vmem [shape: f32[2,8,256], index: 0, kind: input, shape index: {}]
  %s1 = inlined_call_operand.vmem [shape: f32[9,256], index: 1, kind: input, shape index: {}]
  %s2 = inlined_call_operand.vmem [shape: f32[8,80], index: 2, kind: input, shape index: {}]
  %s3 = inlined_call_operand.vmem [shape: f32[8,80], index: 3, kind: input, shape index: {}]
  %s4 = inlined_call_operand.vmem [shape: f32[8,80], index: 4, kind: input, shape index: {}]
  %s5 = inlined_call_operand.vmem [shape: f32[8,80], index: 5, kind: input, shape index: {}]
  %s6 = inlined_call_operand.vmem [shape: f32[8,80], index: 6, kind: input, shape index: {}]
  %s7 = inlined_call_operand.vmem [shape: f32[8,80], index: 7, kind: input, shape index: {}]
  %s8 = inlined_call_operand.vmem [shape: f32[2,8,256], index: 8, kind: output, shape index: {}]
  %s9 = sld [smem:[#allocation0]]
  $region65: #{conn3_pallas.1} parent=0
    _
  %s11 = ssub.s32 1, %s9
  %s12 = scalar_select 0, %s11, %s9
  loop: start=0, step=1, limit=4
  $region2: #{conn3_pallas.1} parent=0 // loop_pre_header
    _
  $region3: #{conn3_pallas.1} parent=0 // loop_header
    %s14 = sphi 0, %s18
    %p15 = scmp.ge.s32.totalorder %s14, 4
    %s24 = sphi 0, %s26
    %s27 = sphi 0, %s24
    %s28 = sphi 0, %s27
    %s44 = sphi 0, %s28
    %s48 = sphi 0, %s48
    %s50 = sphi 0, %s48
    %s51 = sphi 0, %s50
    %s65 = sphi 0, %s51
    %s69 = sphi 0, %s69
    %s71 = sphi 0, %s69
    %s72 = sphi 0, %s71
    %s86 = sphi 0, %s72
    %s90 = sphi 0, %s90
    %s92 = sphi 0, %s90
    %s93 = sphi 0, %s92
    %s107 = sphi 0, %s93
    %s111 = sphi 0, %s111
    %s113 = sphi 0, %s111
    %s114 = sphi 0, %s113
    %s128 = sphi 0, %s114
    %s132 = sphi 0, %s132
    %s134 = sphi 0, %s132
    %s135 = sphi 0, %s134
    %s149 = sphi 0, %s135
    %s153 = sphi 0, %s153
    %s155 = sphi 0, %s153
    %s156 = sphi 0, %s155
    %s170 = sphi 0, %s156
    %s174 = sphi 0, %s174
    %s176 = sphi 0, %s174
    %s177 = sphi 0, %s176
    %s191 = sphi 0, %s177
    %s197 = sphi 0, %s199
    %s200 = sphi 0, %s197
    %s201 = sphi 0, %s200
    %s217 = sphi 0, %s201
  $region4: #{conn3_pallas.1} parent=0 // loop_header_branch
    %17 = sbr.rel (%p15) target = $region8
  $region5: #{conn3_pallas.1} parent=0 // loop_body
    %s19 = ssub.s32 %s14, 1
    %s20 = ssub.s32 %s14, 2
    %s21 = sadd.s32 %s14, 1
    %s22 = ssub.s32 %s14, %s21
    %p23 = scmp.eq.s32.totalorder %s22, 0
    %s25 = sadd.s32 %s24, 1
    %s26 = scalar_select %p23, %s24, %s25
    %p29 = pneg %p23
    %p30 = scmp.eq.s32.totalorder %s14, 1
    %p31 = por %p29, %p30
    %p32 = scmp.ne.s32.totalorder %s24, %s27
    %p33 = scmp.eq.s32.totalorder %s14, 0
    %p34 = por %p32, %p33
    %p35 = scmp.ne.s32.totalorder %s24, %s27
    %p36 = scmp.eq.s32.totalorder %s19, 1
    %p37 = por %p35, %p36
    %p38 = scmp.ne.s32.totalorder %s27, %s28
    %p39 = scmp.eq.s32.totalorder %s19, 0
    %p40 = por %p38, %p39
    %p41 = scmp.ne.s32.totalorder %s27, %s28
    %p42 = scmp.eq.s32.totalorder %s20, 1
    %p43 = por %p41, %p42
    %p45 = scmp.ne.s32.totalorder %s28, %s44
    %p46 = scmp.eq.s32.totalorder %s20, 0
    %p47 = por %p45, %p46
    %s49 = sadd.s32 %s48, 1
    %p52 = scmp.eq.s32.totalorder %s14, 1
    %p53 = scmp.ne.s32.totalorder %s48, %s50
    %p54 = scmp.eq.s32.totalorder %s14, 0
    %p55 = por %p53, %p54
    %p56 = scmp.ne.s32.totalorder %s48, %s50
    %p57 = scmp.eq.s32.totalorder %s19, 1
    %p58 = por %p56, %p57
    %p59 = scmp.ne.s32.totalorder %s50, %s51
    %p60 = scmp.eq.s32.totalorder %s19, 0
    %p61 = por %p59, %p60
    %p62 = scmp.ne.s32.totalorder %s50, %s51
    %p63 = scmp.eq.s32.totalorder %s20, 1
    %p64 = por %p62, %p63
    %p66 = scmp.ne.s32.totalorder %s51, %s65
    %p67 = scmp.eq.s32.totalorder %s20, 0
    %p68 = por %p66, %p67
    %s70 = sadd.s32 %s69, 1
    %p73 = scmp.eq.s32.totalorder %s14, 1
    %p74 = scmp.ne.s32.totalorder %s69, %s71
    %p75 = scmp.eq.s32.totalorder %s14, 0
    %p76 = por %p74, %p75
    %p77 = scmp.ne.s32.totalorder %s69, %s71
    %p78 = scmp.eq.s32.totalorder %s19, 1
    %p79 = por %p77, %p78
    %p80 = scmp.ne.s32.totalorder %s71, %s72
    %p81 = scmp.eq.s32.totalorder %s19, 0
    %p82 = por %p80, %p81
    %p83 = scmp.ne.s32.totalorder %s71, %s72
    %p84 = scmp.eq.s32.totalorder %s20, 1
    %p85 = por %p83, %p84
    %p87 = scmp.ne.s32.totalorder %s72, %s86
    %p88 = scmp.eq.s32.totalorder %s20, 0
    %p89 = por %p87, %p88
    %s91 = sadd.s32 %s90, 1
    %p94 = scmp.eq.s32.totalorder %s14, 1
    %p95 = scmp.ne.s32.totalorder %s90, %s92
    %p96 = scmp.eq.s32.totalorder %s14, 0
    %p97 = por %p95, %p96
    %p98 = scmp.ne.s32.totalorder %s90, %s92
    %p99 = scmp.eq.s32.totalorder %s19, 1
    %p100 = por %p98, %p99
    %p101 = scmp.ne.s32.totalorder %s92, %s93
    %p102 = scmp.eq.s32.totalorder %s19, 0
    %p103 = por %p101, %p102
    %p104 = scmp.ne.s32.totalorder %s92, %s93
    %p105 = scmp.eq.s32.totalorder %s20, 1
    %p106 = por %p104, %p105
    %p108 = scmp.ne.s32.totalorder %s93, %s107
    %p109 = scmp.eq.s32.totalorder %s20, 0
    %p110 = por %p108, %p109
    %s112 = sadd.s32 %s111, 1
    %p115 = scmp.eq.s32.totalorder %s14, 1
    %p116 = scmp.ne.s32.totalorder %s111, %s113
    %p117 = scmp.eq.s32.totalorder %s14, 0
    %p118 = por %p116, %p117
    %p119 = scmp.ne.s32.totalorder %s111, %s113
    %p120 = scmp.eq.s32.totalorder %s19, 1
    %p121 = por %p119, %p120
    %p122 = scmp.ne.s32.totalorder %s113, %s114
    %p123 = scmp.eq.s32.totalorder %s19, 0
    %p124 = por %p122, %p123
    %p125 = scmp.ne.s32.totalorder %s113, %s114
    %p126 = scmp.eq.s32.totalorder %s20, 1
    %p127 = por %p125, %p126
    %p129 = scmp.ne.s32.totalorder %s114, %s128
    %p130 = scmp.eq.s32.totalorder %s20, 0
    %p131 = por %p129, %p130
    %s133 = sadd.s32 %s132, 1
    %p136 = scmp.eq.s32.totalorder %s14, 1
    %p137 = scmp.ne.s32.totalorder %s132, %s134
    %p138 = scmp.eq.s32.totalorder %s14, 0
    %p139 = por %p137, %p138
    %p140 = scmp.ne.s32.totalorder %s132, %s134
    %p141 = scmp.eq.s32.totalorder %s19, 1
    %p142 = por %p140, %p141
    %p143 = scmp.ne.s32.totalorder %s134, %s135
    %p144 = scmp.eq.s32.totalorder %s19, 0
    %p145 = por %p143, %p144
    %p146 = scmp.ne.s32.totalorder %s134, %s135
    %p147 = scmp.eq.s32.totalorder %s20, 1
    %p148 = por %p146, %p147
    %p150 = scmp.ne.s32.totalorder %s135, %s149
    %p151 = scmp.eq.s32.totalorder %s20, 0
    %p152 = por %p150, %p151
    %s154 = sadd.s32 %s153, 1
    %p157 = scmp.eq.s32.totalorder %s14, 1
    %p158 = scmp.ne.s32.totalorder %s153, %s155
    %p159 = scmp.eq.s32.totalorder %s14, 0
    %p160 = por %p158, %p159
    %p161 = scmp.ne.s32.totalorder %s153, %s155
    %p162 = scmp.eq.s32.totalorder %s19, 1
    %p163 = por %p161, %p162
    %p164 = scmp.ne.s32.totalorder %s155, %s156
    %p165 = scmp.eq.s32.totalorder %s19, 0
    %p166 = por %p164, %p165
    %p167 = scmp.ne.s32.totalorder %s155, %s156
    %p168 = scmp.eq.s32.totalorder %s20, 1
    %p169 = por %p167, %p168
    %p171 = scmp.ne.s32.totalorder %s156, %s170
    %p172 = scmp.eq.s32.totalorder %s20, 0
    %p173 = por %p171, %p172
    %s175 = sadd.s32 %s174, 1
    %p178 = scmp.eq.s32.totalorder %s14, 1
    %p179 = scmp.ne.s32.totalorder %s174, %s176
    %p180 = scmp.eq.s32.totalorder %s14, 0
    %p181 = por %p179, %p180
    %p182 = scmp.ne.s32.totalorder %s174, %s176
    %p183 = scmp.eq.s32.totalorder %s19, 1
    %p184 = por %p182, %p183
    %p185 = scmp.ne.s32.totalorder %s176, %s177
    %p186 = scmp.eq.s32.totalorder %s19, 0
    %p187 = por %p185, %p186
    %p188 = scmp.ne.s32.totalorder %s176, %s177
    %p189 = scmp.eq.s32.totalorder %s20, 1
    %p190 = por %p188, %p189
    %p192 = scmp.ne.s32.totalorder %s177, %s191
    %p193 = scmp.eq.s32.totalorder %s20, 0
    %p194 = por %p192, %p193
    %s195 = ssub.s32 %s14, %s21
    %p196 = scmp.eq.s32.totalorder %s195, 0
    %s198 = sadd.s32 %s197, 1
    %s199 = scalar_select %p196, %s197, %s198
    %p202 = pneg %p196
    %p203 = scmp.eq.s32.totalorder %s14, 1
    %p204 = por %p202, %p203
    %p205 = scmp.ne.s32.totalorder %s197, %s200
    %p206 = scmp.eq.s32.totalorder %s14, 0
    %p207 = por %p205, %p206
    %p208 = scmp.ne.s32.totalorder %s197, %s200
    %p209 = scmp.eq.s32.totalorder %s19, 1
    %p210 = por %p208, %p209
    %p211 = scmp.ne.s32.totalorder %s200, %s201
    %p212 = scmp.eq.s32.totalorder %s19, 0
    %p213 = por %p211, %p212
    %p214 = scmp.ne.s32.totalorder %s200, %s201
    %p215 = scmp.eq.s32.totalorder %s20, 1
    %p216 = por %p214, %p215
    %p218 = scmp.ne.s32.totalorder %s201, %s217
    %p219 = scmp.eq.s32.totalorder %s20, 0
    %p220 = por %p218, %p219
    %p221 = scmp.le.s32.totalorder 1, %s14
    %p222 = scmp.lt.s32.totalorder %s14, 3
    %p223 = pnand %p221, %p222
    %p224 = pneg %p223
    // Predicated region
    $region9: #{conn3_pallas.1} parent=5 // pred_check
      _
    $region10: #{conn3_pallas.1} parent=5 // pred_check_branch
      %226 = sbr.rel (%p223) target = $region12
    $region11: #{conn3_pallas.1} parent=5 // pred_region
      %s227 = ssub.s32 %s14, 1
      // Predicated region
      $region13: #{conn3_pallas.1} parent=11 // pred_check
        %p228 = pneg %p61
      $region14: #{conn3_pallas.1} parent=11 // pred_check_branch
        %230 = sbr.rel (%p228) target = $region16
      $region15: #{conn3_pallas.1} parent=11 // pred_region
        _
      $region16: #{conn3_pallas.1} parent=11 // pred_fallthru
        _
      // Predicated region
      $region17: #{conn3_pallas.1} parent=11 // pred_check
        %p231 = pneg %p82
      $region18: #{conn3_pallas.1} parent=11 // pred_check_branch
        %233 = sbr.rel (%p231) target = $region20
      $region19: #{conn3_pallas.1} parent=11 // pred_region
        _
      $region20: #{conn3_pallas.1} parent=11 // pred_fallthru
        _
      // Predicated region
      $region21: #{conn3_pallas.1} parent=11 // pred_check
        %p234 = pneg %p103
      $region22: #{conn3_pallas.1} parent=11 // pred_check_branch
        %236 = sbr.rel (%p234) target = $region24
      $region23: #{conn3_pallas.1} parent=11 // pred_region
        _
      $region24: #{conn3_pallas.1} parent=11 // pred_fallthru
        _
      // Predicated region
      $region25: #{conn3_pallas.1} parent=11 // pred_check
        %p237 = pneg %p124
      $region26: #{conn3_pallas.1} parent=11 // pred_check_branch
        %239 = sbr.rel (%p237) target = $region28
      $region27: #{conn3_pallas.1} parent=11 // pred_region
        _
      $region28: #{conn3_pallas.1} parent=11 // pred_fallthru
        _
      // Predicated region
      $region29: #{conn3_pallas.1} parent=11 // pred_check
        %p240 = pneg %p145
      $region30: #{conn3_pallas.1} parent=11 // pred_check_branch
        %242 = sbr.rel (%p240) target = $region32
      $region31: #{conn3_pallas.1} parent=11 // pred_region
        _
      $region32: #{conn3_pallas.1} parent=11 // pred_fallthru
        _
      // Predicated region
      $region33: #{conn3_pallas.1} parent=11 // pred_check
        %p243 = pneg %p166
      $region34: #{conn3_pallas.1} parent=11 // pred_check_branch
        %245 = sbr.rel (%p243) target = $region36
      $region35: #{conn3_pallas.1} parent=11 // pred_region
        _
      $region36: #{conn3_pallas.1} parent=11 // pred_fallthru
        _
      // Predicated region
      $region37: #{conn3_pallas.1} parent=11 // pred_check
        %p246 = pneg %p187
      $region38: #{conn3_pallas.1} parent=11 // pred_check_branch
        %248 = sbr.rel (%p246) target = $region40
      $region39: #{conn3_pallas.1} parent=11 // pred_region
        _
      $region40: #{conn3_pallas.1} parent=11 // pred_fallthru
        _
    $region12: #{conn3_pallas.1} parent=5 // pred_fallthru
      _
    %p249 = scmp.lt.s32.totalorder %s14, 2
    // Predicated region
    $region41: #{conn3_pallas.1} parent=5 // pred_check
      %p250 = pneg %p249
    $region42: #{conn3_pallas.1} parent=5 // pred_check_branch
      %252 = sbr.rel (%p250) target = $region44
    $region43: #{conn3_pallas.1} parent=5 // pred_region
      // Predicated region
      $region45: #{conn3_pallas.1} parent=43 // pred_check
        %p253 = pneg %p34
      $region46: #{conn3_pallas.1} parent=43 // pred_check_branch
        %255 = sbr.rel (%p253) target = $region48
      $region47: #{conn3_pallas.1} parent=43 // pred_region
        %p256 = scmp.lt.s32.totalorder %s14, 1
        %s257 = scalar_select %p256, %s14, 1
        %s258 = smul.addr %s257, 2
        %s259 = smul.addr %s258, 8
        %s260 = scalar_lea.vmem %s0, %s259
      $region48: #{conn3_pallas.1} parent=43 // pred_fallthru
        _
    $region44: #{conn3_pallas.1} parent=5 // pred_fallthru
      _
    %p261 = scmp.le.s32.totalorder 1, %s14
    %p262 = scmp.lt.s32.totalorder %s14, 3
    %p263 = pnand %p261, %p262
    %p264 = pneg %p263
    // Predicated region
    $region49: #{conn3_pallas.1} parent=5 // pred_check
      _
    $region50: #{conn3_pallas.1} parent=5 // pred_check_branch
      %266 = sbr.rel (%p263) target = $region52
    $region51: #{conn3_pallas.1} parent=5 // pred_region
      %s267 = ssub.s32 %s14, 1
      %p268 = scmp.lt.s32.totalorder %s19, 1
      %s269 = scalar_select %p268, %s19, 1
      %s270 = smul.addr %s269, 2
      %s271 = smul.addr %s270, 8
      %s272 = scalar_lea.vmem %s0, %s271
      %p273 = pneg %p40
      %p274 = pneg %p37
      %p275 = pneg %p61
      %p276 = pneg %p58
      %p277 = pneg %p82
      %p278 = pneg %p79
      %p279 = pneg %p103
      %p280 = pneg %p100
      %p281 = pneg %p124
      %p282 = pneg %p121
      %p283 = pneg %p145
      %p284 = pneg %p142
      %p285 = pneg %p166
      %p286 = pneg %p163
      %p287 = pneg %p187
      %p288 = pneg %p184
      %p289 = pneg %p213
      %p290 = pneg %p210
      %p291 = scmp.lt.s32.totalorder %s19, 1
      %s292 = scalar_select %p291, %s19, 1
      %s293 = smul.addr %s292, 2
      %s294 = smul.addr %s293, 8
      %s295 = scalar_lea.vmem %s8, %s294
      %p296 = scmp.lt.s32.totalorder %s19, 1
      %s297 = scalar_select %p296, %s19, 1
      %s298 = smul.addr %s297, 2
      %s299 = smul.addr %s298, 8
      %s300 = scalar_lea.vmem %s0, %s299
      %p301 = scmp.lt.s32.totalorder %s19, 1
      %s302 = scalar_select %p301, %s19, 1
      %s303 = smul.addr %s302, 2
      %s304 = smul.addr %s303, 8
      %s305 = scalar_lea.vmem %s8, %s304
      %v306 = vld [vmem:[%s300] sm:$0xff]
      %v307 = vld [vmem:[%s300 + $0x8] sm:$0xff]
      %v308 = vld [vmem:[%s1] sm:$0xff]
      %v309 = vld [vmem:[%s1 + $0x8] sm:$0xff]
      %v310 = vld [vmem:[%s1 + $0x10] sm:$0x1]
      %v311 = vld [vmem:[%s1 + $0x18] sm:$0x1]
      %312 = vrot.lane.b32.xlu0 %v306, 17
      %v313 = vpop.permute.xlu0 %312
      %314 = vrot.lane.b32.xlu0 %v307, 17
      %v315 = vpop.permute.xlu0 %314
      %v316 = vlaneseq
      %v317 = vand.u32 %v316, 127
      %vm318 = vcmp.lt.s32.totalorder %v317, 17
      %v319 = vsel %vm318, %v313, %v315
      %v320 = vsel %vm318, %v315, %v313
      %v321 = vlaneseq
      %v322 = vshrl.u32 %v321, 7
      %v323 = vsub.s32 0, %v322
      %v324 = vrot.slane %v308, %v323
      %v325 = vlaneseq
      %v326 = vshrl.u32 %v325, 7
      %v327 = vsub.s32 0, %v326
      %v328 = vrot.slane %v309, %v327
      %v329 = vmul.f32 %v320, %v324
      %v330 = vmul.f32 %v319, %v328
      %331 = vst [vmem:[#allocation2] sm:$0xff] %v329
      %332 = vst [vmem:[#allocation2 + $0x8] sm:$0xff] %v330
      %333 = vrot.lane.b32.xlu0 %v306, 16
      %v334 = vpop.permute.xlu0 %333
      %335 = vrot.lane.b32.xlu0 %v307, 16
      %v336 = vpop.permute.xlu0 %335
      %vm337 = vcmp.lt.s32.totalorder %v317, 16
      %v338 = vsel %vm337, %v334, %v336
      %v339 = vsel %vm337, %v336, %v334
      %v340 = vlaneseq
      %v341 = vshrl.u32 %v340, 7
      %v342 = vsub.s32 1, %v341
      %v343 = vrot.slane %v308, %v342
      %v344 = vlaneseq
      %v345 = vshrl.u32 %v344, 7
      %v346 = vsub.s32 1, %v345
      %v347 = vrot.slane %v309, %v346
      %v348 = vmul.f32 %v339, %v343
      %v349 = vmul.f32 %v338, %v347
      %350 = vst [vmem:[#allocation2 + $0x10] sm:$0xff] %v348
      %351 = vst [vmem:[#allocation2 + $0x18] sm:$0xff] %v349
      %352 = vrot.lane.b32.xlu0 %v306, 15
      %v353 = vpop.permute.xlu0 %352
      %354 = vrot.lane.b32.xlu0 %v307, 15
      %v355 = vpop.permute.xlu0 %354
      %vm356 = vcmp.lt.s32.totalorder %v317, 15
      %v357 = vsel %vm356, %v353, %v355
      %v358 = vsel %vm356, %v355, %v353
      %v359 = vlaneseq
      %v360 = vshrl.u32 %v359, 7
      %v361 = vsub.s32 2, %v360
      %v362 = vrot.slane %v308, %v361
      %v363 = vlaneseq
      %v364 = vshrl.u32 %v363, 7
      %v365 = vsub.s32 2, %v364
      %v366 = vrot.slane %v309, %v365
      %v367 = vmul.f32 %v358, %v362
      %v368 = vmul.f32 %v357, %v366
      %369 = vst [vmem:[#allocation2 + $0x20] sm:$0xff] %v367
      %370 = vst [vmem:[#allocation2 + $0x28] sm:$0xff] %v368
      %371 = vrot.lane.b32.xlu0 %v306, 1
      %v372 = vpop.permute.xlu0 %371
      %373 = vrot.lane.b32.xlu0 %v307, 1
      %v374 = vpop.permute.xlu0 %373
      %vm375 = vcmp.lt.s32.totalorder %v317, 1
      %v376 = vsel %vm375, %v372, %v374
      %v377 = vsel %vm375, %v374, %v372
      %v378 = vlaneseq
      %v379 = vshrl.u32 %v378, 7
      %v380 = vsub.s32 3, %v379
      %v381 = vrot.slane %v308, %v380
      %v382 = vlaneseq
      %v383 = vshrl.u32 %v382, 7
      %v384 = vsub.s32 3, %v383
      %v385 = vrot.slane %v309, %v384
      %v386 = vmul.f32 %v377, %v381
      %v387 = vmul.f32 %v376, %v385
      %388 = vst [vmem:[#allocation2 + $0x30] sm:$0xff] %v386
      %389 = vst [vmem:[#allocation2 + $0x38] sm:$0xff] %v387
      %390 = vst [vmem:[#allocation2 + $0x40] sm:$0xff] %v306
      %391 = vst [vmem:[#allocation2 + $0x48] sm:$0xff] %v307
      %392 = vrot.lane.b32.xlu0 %v306, 127
      %v393 = vpop.permute.xlu0 %392
      %394 = vrot.lane.b32.xlu0 %v307, 127
      %v395 = vpop.permute.xlu0 %394
      %vm396 = vcmp.lt.s32.totalorder %v317, 127
      %v397 = vsel %vm396, %v393, %v395
      %v398 = vsel %vm396, %v395, %v393
      %v399 = vlaneseq
      %v400 = vshrl.u32 %v399, 7
      %v401 = vsub.s32 5, %v400
      %v402 = vrot.slane %v308, %v401
      %v403 = vlaneseq
      %v404 = vshrl.u32 %v403, 7
      %v405 = vsub.s32 5, %v404
      %v406 = vrot.slane %v309, %v405
      %v407 = vmul.f32 %v397, %v402
      %v408 = vmul.f32 %v398, %v406
      %409 = vst [vmem:[#allocation2 + $0x50] sm:$0xff] %v407
      %410 = vst [vmem:[#allocation2 + $0x58] sm:$0xff] %v408
      %411 = vrot.lane.b32.xlu0 %v306, 113
      %v412 = vpop.permute.xlu0 %411
      %413 = vrot.lane.b32.xlu0 %v307, 113
      %v414 = vpop.permute.xlu0 %413
      %vm415 = vcmp.lt.s32.totalorder %v317, 113
      %v416 = vsel %vm415, %v412, %v414
      %v417 = vsel %vm415, %v414, %v412
      %v418 = vlaneseq
      %v419 = vshrl.u32 %v418, 7
      %v420 = vsub.s32 6, %v419
      %v421 = vrot.slane %v308, %v420
      %v422 = vlaneseq
      %v423 = vshrl.u32 %v422, 7
      %v424 = vsub.s32 6, %v423
      %v425 = vrot.slane %v309, %v424
      %v426 = vmul.f32 %v416, %v421
      %v427 = vmul.f32 %v417, %v425
      %428 = vst [vmem:[#allocation2 + $0x60] sm:$0xff] %v426
      %429 = vst [vmem:[#allocation2 + $0x68] sm:$0xff] %v427
      %430 = vrot.lane.b32.xlu0 %v306, 112
      %v431 = vpop.permute.xlu0 %430
      %432 = vrot.lane.b32.xlu0 %v307, 112
      %v433 = vpop.permute.xlu0 %432
      %vm434 = vcmp.lt.s32.totalorder %v317, 112
      %v435 = vsel %vm434, %v431, %v433
      %v436 = vsel %vm434, %v433, %v431
      %v437 = vlaneseq
      %v438 = vshrl.u32 %v437, 7
      %v439 = vsub.s32 7, %v438
      %v440 = vrot.slane %v308, %v439
      %v441 = vlaneseq
      %v442 = vshrl.u32 %v441, 7
      %v443 = vsub.s32 7, %v442
      %v444 = vrot.slane %v309, %v443
      %v445 = vmul.f32 %v435, %v440
      %v446 = vmul.f32 %v436, %v444
      %447 = vst [vmem:[#allocation2 + $0x70] sm:$0xff] %v445
      %448 = vst [vmem:[#allocation2 + $0x78] sm:$0xff] %v446
      %449 = vrot.lane.b32.xlu0 %v306, 111
      %v450 = vpop.permute.xlu0 %449
      %451 = vrot.lane.b32.xlu0 %v307, 111
      %v452 = vpop.permute.xlu0 %451
      %vm453 = vcmp.lt.s32.totalorder %v317, 111
      %v454 = vsel %vm453, %v450, %v452
      %v455 = vsel %vm453, %v452, %v450
      %v456 = vlaneseq
      %v457 = vshrl.u32 %v456, 7
      %v458 = vsub.s32 0, %v457
      %v459 = vrot.slane %v310, %v458
      %v460 = vlaneseq
      %v461 = vshrl.u32 %v460, 7
      %v462 = vsub.s32 0, %v461
      %v463 = vrot.slane %v311, %v462
      %v464 = vmul.f32 %v454, %v459
      %v465 = vmul.f32 %v455, %v463
      %466 = vst [vmem:[#allocation2 + $0x80] sm:$0xff] %v464
      %467 = vst [vmem:[#allocation2 + $0x88] sm:$0xff] %v465
      %468 = vst [vmem:[#allocation2 + $0x90] sm:$0xff] 1.0
      %469 = vst [vmem:[#allocation2 + $0x98] sm:$0xff] 1.0
      %v470 = vld [vmem:[%s2] sm:$0xff]
      %v471 = vld [vmem:[#allocation2] sm:$0xff]
      %v472 = vld [vmem:[#allocation2 + $0x8] sm:$0xff]
      %v473 = vld [vmem:[#allocation2 + $0x10] sm:$0xff]
      %v474 = vld [vmem:[#allocation2 + $0x18] sm:$0xff]
      %v475 = vld [vmem:[#allocation2 + $0x20] sm:$0xff]
      %v476 = vld [vmem:[#allocation2 + $0x28] sm:$0xff]
      %v477 = vld [vmem:[#allocation2 + $0x30] sm:$0xff]
      %v478 = vld [vmem:[#allocation2 + $0x38] sm:$0xff]
      %v479 = vld [vmem:[#allocation2 + $0x40] sm:$0xff]
      %v480 = vld [vmem:[#allocation2 + $0x48] sm:$0xff]
      %v481 = vld [vmem:[#allocation2 + $0x50] sm:$0xff]
      %v482 = vld [vmem:[#allocation2 + $0x58] sm:$0xff]
      %v483 = vld [vmem:[#allocation2 + $0x60] sm:$0xff]
      %v484 = vld [vmem:[#allocation2 + $0x68] sm:$0xff]
      %v485 = vld [vmem:[#allocation2 + $0x70] sm:$0xff]
      %v486 = vld [vmem:[#allocation2 + $0x78] sm:$0xff]
      %v487 = vld [vmem:[#allocation2 + $0x80] sm:$0xff]
      %v488 = vld [vmem:[#allocation2 + $0x88] sm:$0xff]
      %v489 = vld [vmem:[#allocation2 + $0x90] sm:$0xff]
      %v490 = vld [vmem:[#allocation2 + $0x98] sm:$0xff]
      %vm491 = vcmask 654336
      %v493 = vsel %vm491, %v470, 0
      %495 = vmatprep.subr.mxu0 %v472
      %496 = vmatpush1.msra.mxu0 %v471
      %497 = vmatprep.subr.mxu0 %v474
      %498 = vmatpush1.msra.mxu0 %v473
      %499 = vmatprep.subr.mxu0 %v476
      %500 = vmatpush1.msra.mxu0 %v475
      %501 = vmatprep.subr.mxu0 %v478
      %502 = vmatpush1.msra.mxu0 %v477
      %503 = vmatprep.subr.mxu0 %v480
      %504 = vmatpush1.msra.mxu0 %v479
      %505 = vmatprep.subr.mxu0 %v482
      %506 = vmatpush1.msra.mxu0 %v481
      %507 = vmatprep.subr.mxu0 %v484
      %508 = vmatpush1.msra.mxu0 %v483
      %509 = vmatprep.subr.mxu0 %v486
      %510 = vmatpush1.msra.mxu0 %v485
      %511 = vmatprep.subr.mxu0 %v488
      %512 = vmatpush1.msra.mxu0 %v487
      %513 = vmatprep.subr.mxu0 %v490
      %514 = vmatpush1.msra.mxu0 %v489
      %515 = vmatprep.subr.mxu0 0.0
      %516 = vmatpush1.msra.mxu0 0.0
      %517 = vmatprep.subr.mxu0 0.0
      %518 = vmatpush1.msra.mxu0 0.0
      %519 = vmatprep.subr.mxu0 0.0
      %520 = vmatpush1.msra.mxu0 0.0
      %521 = vmatprep.subr.mxu0 0.0
      %522 = vmatpush1.msra.mxu0 0.0
      %523 = vmatprep.subr.mxu0 0.0
      %524 = vmatpush1.msra.mxu0 0.0
      %525 = vmatprep.subr.mxu0 0.0
      %526 = vmatpush1.msra.mxu0 0.0
      %527 = vmatprep.subr.mxu0 0.0
      %528 = vmatpush1.msra.mxu0 0.0
      %529 = vmatprep.subr.mxu0 0.0
      %530 = vmatpush1.msra.mxu0 0.0
      %531 = vmatprep.subr.mxu0 0.0
      %532 = vmatpush1.msra.mxu0 0.0
      %533 = vmatprep.subr.mxu0 0.0
      %534 = vmatpush1.msra.mxu0 0.0
      %535 = vmatprep.subr.mxu0 0.0
      %536 = vmatpush1.msra.mxu0 0.0
      %537 = vmatprep.subr.mxu0 0.0
      %538 = vmatpush1.msra.mxu0 0.0
      %539 = vmatprep.subr.mxu0 0.0
      %540 = vmatpush1.msra.mxu0 0.0
      %541 = vmatprep.subr.mxu0 0.0
      %542 = vmatpush1.msra.mxu0 0.0
      %543 = vmatprep.subr.mxu0 0.0
      %544 = vmatpush1.msra.mxu0 0.0
      %545 = vmatprep.subr.mxu0 0.0
      %546 = vmatpush1.msra.mxu0 0.0
      %547 = vmatprep.subr.mxu0 0.0
      %548 = vmatpush1.msra.mxu0 0.0
      %549 = vmatprep.subr.mxu0 0.0
      %550 = vmatpush1.msra.mxu0 0.0
      %551 = vmatprep.subr.mxu0 0.0
      %552 = vmatpush1.msra.mxu0 0.0
      %553 = vmatprep.subr.mxu0 0.0
      %554 = vmatpush1.msra.mxu0 0.0
      %555 = vmatprep.subr.mxu0 0.0
      %556 = vmatpush1.msra.mxu0 0.0
      %557 = vmatprep.subr.mxu0 0.0
      %558 = vmatpush1.msra.mxu0 0.0
      %559 = vmatprep.mubr.f32.mxu0 0.0
      %560 = vmatmul.mubr.f32.gmra.mrb[0].mxu0 %v493
      %v561 = vpop.f32.mrb[0].mxu0
      %v562 = vadd.f32 0.0, %v561
      %v563 = vpop.f32.mrb[0].mxu0
      %v564 = vadd.f32 0.0, %v563
      %565 = vdwg.mxu0
      %566 = vrot.lane.b32.xlu0 %v562, 17
      %v567 = vpop.permute.xlu0 %566
      %568 = vrot.lane.b32.xlu0 %v564, 17
      %v569 = vpop.permute.xlu0 %568
      %v570 = vsel %vm318, %v567, %v569
      %v571 = vsel %vm318, %v569, %v567
      %v572 = vmul.f32 %v571, %v324
      %v573 = vmul.f32 %v570, %v328
      %574 = vst [vmem:[#allocation2] sm:$0xff] %v572
      %575 = vst [vmem:[#allocation2 + $0x8] sm:$0xff] %v573
      %576 = vrot.lane.b32.xlu0 %v562, 16
      %v577 = vpop.permute.xlu0 %576
      %578 = vrot.lane.b32.xlu0 %v564, 16
      %v579 = vpop.permute.xlu0 %578
      %v580 = vsel %vm337, %v577, %v579
      %v581 = vsel %vm337, %v579, %v577
      %v582 = vmul.f32 %v581, %v343
      %v583 = vmul.f32 %v580, %v347
      %584 = vst [vmem:[#allocation2 + $0x10] sm:$0xff] %v582
      %585 = vst [vmem:[#allocation2 + $0x18] sm:$0xff] %v583
      %586 = vrot.lane.b32.xlu0 %v562, 15
      %v587 = vpop.permute.xlu0 %586
      %588 = vrot.lane.b32.xlu0 %v564, 15
      %v589 = vpop.permute.xlu0 %588
      %v590 = vsel %vm356, %v587, %v589
      %v591 = vsel %vm356, %v589, %v587
      %v592 = vmul.f32 %v591, %v362
      %v593 = vmul.f32 %v590, %v366
      %594 = vst [vmem:[#allocation2 + $0x20] sm:$0xff] %v592
      %595 = vst [vmem:[#allocation2 + $0x28] sm:$0xff] %v593
      %596 = vrot.lane.b32.xlu0 %v562, 1
      %v597 = vpop.permute.xlu0 %596
      %598 = vrot.lane.b32.xlu0 %v564, 1
      %v599 = vpop.permute.xlu0 %598
      %v600 = vsel %vm375, %v597, %v599
      %v601 = vsel %vm375, %v599, %v597
      %v602 = vmul.f32 %v601, %v381
      %v603 = vmul.f32 %v600, %v385
      %604 = vst [vmem:[#allocation2 + $0x30] sm:$0xff] %v602
      %605 = vst [vmem:[#allocation2 + $0x38] sm:$0xff] %v603
      %606 = vst [vmem:[#allocation2 + $0x40] sm:$0xff] %v562
      %607 = vst [vmem:[#allocation2 + $0x48] sm:$0xff] %v564
      %608 = vrot.lane.b32.xlu0 %v562, 127
      %v609 = vpop.permute.xlu0 %608
      %610 = vrot.lane.b32.xlu0 %v564, 127
      %v611 = vpop.permute.xlu0 %610
      %v612 = vsel %vm396, %v609, %v611
      %v613 = vsel %vm396, %v611, %v609
      %v614 = vmul.f32 %v612, %v402
      %v615 = vmul.f32 %v613, %v406
      %616 = vst [vmem:[#allocation2 + $0x50] sm:$0xff] %v614
      %617 = vst [vmem:[#allocation2 + $0x58] sm:$0xff] %v615
      %618 = vrot.lane.b32.xlu0 %v562, 113
      %v619 = vpop.permute.xlu0 %618
      %620 = vrot.lane.b32.xlu0 %v564, 113
      %v621 = vpop.permute.xlu0 %620
      %v622 = vsel %vm415, %v619, %v621
      %v623 = vsel %vm415, %v621, %v619
      %v624 = vmul.f32 %v622, %v421
      %v625 = vmul.f32 %v623, %v425
      %626 = vst [vmem:[#allocation2 + $0x60] sm:$0xff] %v624
      %627 = vst [vmem:[#allocation2 + $0x68] sm:$0xff] %v625
      %628 = vrot.lane.b32.xlu0 %v562, 112
      %v629 = vpop.permute.xlu0 %628
      %630 = vrot.lane.b32.xlu0 %v564, 112
      %v631 = vpop.permute.xlu0 %630
      %v632 = vsel %vm434, %v629, %v631
      %v633 = vsel %vm434, %v631, %v629
      %v634 = vmul.f32 %v632, %v440
      %v635 = vmul.f32 %v633, %v444
      %636 = vst [vmem:[#allocation2 + $0x70] sm:$0xff] %v634
      %637 = vst [vmem:[#allocation2 + $0x78] sm:$0xff] %v635
      %638 = vrot.lane.b32.xlu0 %v562, 111
      %v639 = vpop.permute.xlu0 %638
      %640 = vrot.lane.b32.xlu0 %v564, 111
      %v641 = vpop.permute.xlu0 %640
      %v642 = vsel %vm453, %v639, %v641
      %v643 = vsel %vm453, %v641, %v639
      %v644 = vmul.f32 %v642, %v459
      %v645 = vmul.f32 %v643, %v463
      %646 = vst [vmem:[#allocation2 + $0x80] sm:$0xff] %v644
      %647 = vst [vmem:[#allocation2 + $0x88] sm:$0xff] %v645
      %v648 = vld [vmem:[%s3] sm:$0xff]
      %v649 = vld [vmem:[#allocation2] sm:$0xff]
      %v650 = vld [vmem:[#allocation2 + $0x8] sm:$0xff]
      %v651 = vld [vmem:[#allocation2 + $0x10] sm:$0xff]
      %v652 = vld [vmem:[#allocation2 + $0x18] sm:$0xff]
      %v653 = vld [vmem:[#allocation2 + $0x20] sm:$0xff]
      %v654 = vld [vmem:[#allocation2 + $0x28] sm:$0xff]
      %v655 = vld [vmem:[#allocation2 + $0x30] sm:$0xff]
      %v656 = vld [vmem:[#allocation2 + $0x38] sm:$0xff]
      %v657 = vld [vmem:[#allocation2 + $0x40] sm:$0xff]
      %v658 = vld [vmem:[#allocation2 + $0x48] sm:$0xff]
      %v659 = vld [vmem:[#allocation2 + $0x50] sm:$0xff]
      %v660 = vld [vmem:[#allocation2 + $0x58] sm:$0xff]
      %v661 = vld [vmem:[#allocation2 + $0x60] sm:$0xff]
      %v662 = vld [vmem:[#allocation2 + $0x68] sm:$0xff]
      %v663 = vld [vmem:[#allocation2 + $0x70] sm:$0xff]
      %v664 = vld [vmem:[#allocation2 + $0x78] sm:$0xff]
      %v665 = vld [vmem:[#allocation2 + $0x80] sm:$0xff]
      %v666 = vld [vmem:[#allocation2 + $0x88] sm:$0xff]
      %v667 = vld [vmem:[#allocation2 + $0x90] sm:$0xff]
      %v668 = vld [vmem:[#allocation2 + $0x98] sm:$0xff]
      %v670 = vsel %vm491, %v648, 0
      %672 = vmatprep.subr.mxu0 %v650
      %673 = vmatpush1.msra.mxu0 %v649
      %674 = vmatprep.subr.mxu0 %v652
      %675 = vmatpush1.msra.mxu0 %v651
      %676 = vmatprep.subr.mxu0 %v654
      %677 = vmatpush1.msra.mxu0 %v653
      %678 = vmatprep.subr.mxu0 %v656
      %679 = vmatpush1.msra.mxu0 %v655
      %680 = vmatprep.subr.mxu0 %v658
      %681 = vmatpush1.msra.mxu0 %v657
      %682 = vmatprep.subr.mxu0 %v660
      %683 = vmatpush1.msra.mxu0 %v659
      %684 = vmatprep.subr.mxu0 %v662
      %685 = vmatpush1.msra.mxu0 %v661
      %686 = vmatprep.subr.mxu0 %v664
      %687 = vmatpush1.msra.mxu0 %v663
      %688 = vmatprep.subr.mxu0 %v666
      %689 = vmatpush1.msra.mxu0 %v665
      %690 = vmatprep.subr.mxu0 %v668
      %691 = vmatpush1.msra.mxu0 %v667
      %692 = vmatprep.subr.mxu0 0.0
      %693 = vmatpush1.msra.mxu0 0.0
      %694 = vmatprep.subr.mxu0 0.0
      %695 = vmatpush1.msra.mxu0 0.0
      %696 = vmatprep.subr.mxu0 0.0
      %697 = vmatpush1.msra.mxu0 0.0
      %698 = vmatprep.subr.mxu0 0.0
      %699 = vmatpush1.msra.mxu0 0.0
      %700 = vmatprep.subr.mxu0 0.0
      %701 = vmatpush1.msra.mxu0 0.0
      %702 = vmatprep.subr.mxu0 0.0
      %703 = vmatpush1.msra.mxu0 0.0
      %704 = vmatprep.subr.mxu0 0.0
      %705 = vmatpush1.msra.mxu0 0.0
      %706 = vmatprep.subr.mxu0 0.0
      %707 = vmatpush1.msra.mxu0 0.0
      %708 = vmatprep.subr.mxu0 0.0
      %709 = vmatpush1.msra.mxu0 0.0
      %710 = vmatprep.subr.mxu0 0.0
      %711 = vmatpush1.msra.mxu0 0.0
      %712 = vmatprep.subr.mxu0 0.0
      %713 = vmatpush1.msra.mxu0 0.0
      %714 = vmatprep.subr.mxu0 0.0
      %715 = vmatpush1.msra.mxu0 0.0
      %716 = vmatprep.subr.mxu0 0.0
      %717 = vmatpush1.msra.mxu0 0.0
      %718 = vmatprep.subr.mxu0 0.0
      %719 = vmatpush1.msra.mxu0 0.0
      %720 = vmatprep.subr.mxu0 0.0
      %721 = vmatpush1.msra.mxu0 0.0
      %722 = vmatprep.subr.mxu0 0.0
      %723 = vmatpush1.msra.mxu0 0.0
      %724 = vmatprep.subr.mxu0 0.0
      %725 = vmatpush1.msra.mxu0 0.0
      %726 = vmatprep.subr.mxu0 0.0
      %727 = vmatpush1.msra.mxu0 0.0
      %728 = vmatprep.subr.mxu0 0.0
      %729 = vmatpush1.msra.mxu0 0.0
      %730 = vmatprep.subr.mxu0 0.0
      %731 = vmatpush1.msra.mxu0 0.0
      %732 = vmatprep.subr.mxu0 0.0
      %733 = vmatpush1.msra.mxu0 0.0
      %734 = vmatprep.subr.mxu0 0.0
      %735 = vmatpush1.msra.mxu0 0.0
      %736 = vmatprep.mubr.f32.mxu0 0.0
      %737 = vmatmul.mubr.f32.gmra.mrb[0].mxu0 %v670
      %v738 = vpop.f32.mrb[0].mxu0
      %v739 = vadd.f32 0.0, %v738
      %v740 = vpop.f32.mrb[0].mxu0
      %v741 = vadd.f32 0.0, %v740
      %742 = vdwg.mxu0
      %743 = vrot.lane.b32.xlu0 %v739, 17
      %v744 = vpop.permute.xlu0 %743
      %745 = vrot.lane.b32.xlu0 %v741, 17
      %v746 = vpop.permute.xlu0 %745
      %v747 = vsel %vm318, %v744, %v746
      %v748 = vsel %vm318, %v746, %v744
      %v749 = vmul.f32 %v748, %v324
      %v750 = vmul.f32 %v747, %v328
      %751 = vst [vmem:[#allocation2] sm:$0xff] %v749
      %752 = vst [vmem:[#allocation2 + $0x8] sm:$0xff] %v750
      %753 = vrot.lane.b32.xlu0 %v739, 16
      %v754 = vpop.permute.xlu0 %753
      %755 = vrot.lane.b32.xlu0 %v741, 16
      %v756 = vpop.permute.xlu0 %755
      %v757 = vsel %vm337, %v754, %v756
      %v758 = vsel %vm337, %v756, %v754
      %v759 = vmul.f32 %v758, %v343
      %v760 = vmul.f32 %v757, %v347
      %761 = vst [vmem:[#allocation2 + $0x10] sm:$0xff] %v759
      %762 = vst [vmem:[#allocation2 + $0x18] sm:$0xff] %v760
      %763 = vrot.lane.b32.xlu0 %v739, 15
      %v764 = vpop.permute.xlu0 %763
      %765 = vrot.lane.b32.xlu0 %v741, 15
      %v766 = vpop.permute.xlu0 %765
      %v767 = vsel %vm356, %v764, %v766
      %v768 = vsel %vm356, %v766, %v764
      %v769 = vmul.f32 %v768, %v362
      %v770 = vmul.f32 %v767, %v366
      %771 = vst [vmem:[#allocation2 + $0x20] sm:$0xff] %v769
      %772 = vst [vmem:[#allocation2 + $0x28] sm:$0xff] %v770
      %773 = vrot.lane.b32.xlu0 %v739, 1
      %v774 = vpop.permute.xlu0 %773
      %775 = vrot.lane.b32.xlu0 %v741, 1
      %v776 = vpop.permute.xlu0 %775
      %v777 = vsel %vm375, %v774, %v776
      %v778 = vsel %vm375, %v776, %v774
      %v779 = vmul.f32 %v778, %v381
      %v780 = vmul.f32 %v777, %v385
      %781 = vst [vmem:[#allocation2 + $0x30] sm:$0xff] %v779
      %782 = vst [vmem:[#allocation2 + $0x38] sm:$0xff] %v780
      %783 = vst [vmem:[#allocation2 + $0x40] sm:$0xff] %v739
      %784 = vst [vmem:[#allocation2 + $0x48] sm:$0xff] %v741
      %785 = vrot.lane.b32.xlu0 %v739, 127
      %v786 = vpop.permute.xlu0 %785
      %787 = vrot.lane.b32.xlu0 %v741, 127
      %v788 = vpop.permute.xlu0 %787
      %v789 = vsel %vm396, %v786, %v788
      %v790 = vsel %vm396, %v788, %v786
      %v791 = vmul.f32 %v789, %v402
      %v792 = vmul.f32 %v790, %v406
      %793 = vst [vmem:[#allocation2 + $0x50] sm:$0xff] %v791
      %794 = vst [vmem:[#allocation2 + $0x58] sm:$0xff] %v792
      %795 = vrot.lane.b32.xlu0 %v739, 113
      %v796 = vpop.permute.xlu0 %795
      %797 = vrot.lane.b32.xlu0 %v741, 113
      %v798 = vpop.permute.xlu0 %797
      %v799 = vsel %vm415, %v796, %v798
      %v800 = vsel %vm415, %v798, %v796
      %v801 = vmul.f32 %v799, %v421
      %v802 = vmul.f32 %v800, %v425
      %803 = vst [vmem:[#allocation2 + $0x60] sm:$0xff] %v801
      %804 = vst [vmem:[#allocation2 + $0x68] sm:$0xff] %v802
      %805 = vrot.lane.b32.xlu0 %v739, 112
      %v806 = vpop.permute.xlu0 %805
      %807 = vrot.lane.b32.xlu0 %v741, 112
      %v808 = vpop.permute.xlu0 %807
      %v809 = vsel %vm434, %v806, %v808
      %v810 = vsel %vm434, %v808, %v806
      %v811 = vmul.f32 %v809, %v440
      %v812 = vmul.f32 %v810, %v444
      %813 = vst [vmem:[#allocation2 + $0x70] sm:$0xff] %v811
      %814 = vst [vmem:[#allocation2 + $0x78] sm:$0xff] %v812
      %815 = vrot.lane.b32.xlu0 %v739, 111
      %v816 = vpop.permute.xlu0 %815
      %817 = vrot.lane.b32.xlu0 %v741, 111
      %v818 = vpop.permute.xlu0 %817
      %v819 = vsel %vm453, %v816, %v818
      %v820 = vsel %vm453, %v818, %v816
      %v821 = vmul.f32 %v819, %v459
      %v822 = vmul.f32 %v820, %v463
      %823 = vst [vmem:[#allocation2 + $0x80] sm:$0xff] %v821
      %824 = vst [vmem:[#allocation2 + $0x88] sm:$0xff] %v822
      %v825 = vld [vmem:[%s4] sm:$0xff]
      %v826 = vld [vmem:[#allocation2] sm:$0xff]
      %v827 = vld [vmem:[#allocation2 + $0x8] sm:$0xff]
      %v828 = vld [vmem:[#allocation2 + $0x10] sm:$0xff]
      %v829 = vld [vmem:[#allocation2 + $0x18] sm:$0xff]
      %v830 = vld [vmem:[#allocation2 + $0x20] sm:$0xff]
      %v831 = vld [vmem:[#allocation2 + $0x28] sm:$0xff]
      %v832 = vld [vmem:[#allocation2 + $0x30] sm:$0xff]
      %v833 = vld [vmem:[#allocation2 + $0x38] sm:$0xff]
      %v834 = vld [vmem:[#allocation2 + $0x40] sm:$0xff]
      %v835 = vld [vmem:[#allocation2 + $0x48] sm:$0xff]
      %v836 = vld [vmem:[#allocation2 + $0x50] sm:$0xff]
      %v837 = vld [vmem:[#allocation2 + $0x58] sm:$0xff]
      %v838 = vld [vmem:[#allocation2 + $0x60] sm:$0xff]
      %v839 = vld [vmem:[#allocation2 + $0x68] sm:$0xff]
      %v840 = vld [vmem:[#allocation2 + $0x70] sm:$0xff]
      %v841 = vld [vmem:[#allocation2 + $0x78] sm:$0xff]
      %v842 = vld [vmem:[#allocation2 + $0x80] sm:$0xff]
      %v843 = vld [vmem:[#allocation2 + $0x88] sm:$0xff]
      %v844 = vld [vmem:[#allocation2 + $0x90] sm:$0xff]
      %v845 = vld [vmem:[#allocation2 + $0x98] sm:$0xff]
      %v847 = vsel %vm491, %v825, 0
      %849 = vmatprep.subr.mxu0 %v827
      %850 = vmatpush1.msra.mxu0 %v826
      %851 = vmatprep.subr.mxu0 %v829
      %852 = vmatpush1.msra.mxu0 %v828
      %853 = vmatprep.subr.mxu0 %v831
      %854 = vmatpush1.msra.mxu0 %v830
      %855 = vmatprep.subr.mxu0 %v833
      %856 = vmatpush1.msra.mxu0 %v832
      %857 = vmatprep.subr.mxu0 %v835
      %858 = vmatpush1.msra.mxu0 %v834
      %859 = vmatprep.subr.mxu0 %v837
      %860 = vmatpush1.msra.mxu0 %v836
      %861 = vmatprep.subr.mxu0 %v839
      %862 = vmatpush1.msra.mxu0 %v838
      %863 = vmatprep.subr.mxu0 %v841
      %864 = vmatpush1.msra.mxu0 %v840
      %865 = vmatprep.subr.mxu0 %v843
      %866 = vmatpush1.msra.mxu0 %v842
      %867 = vmatprep.subr.mxu0 %v845
      %868 = vmatpush1.msra.mxu0 %v844
      %869 = vmatprep.subr.mxu0 0.0
      %870 = vmatpush1.msra.mxu0 0.0
      %871 = vmatprep.subr.mxu0 0.0
      %872 = vmatpush1.msra.mxu0 0.0
      %873 = vmatprep.subr.mxu0 0.0
      %874 = vmatpush1.msra.mxu0 0.0
      %875 = vmatprep.subr.mxu0 0.0
      %876 = vmatpush1.msra.mxu0 0.0
      %877 = vmatprep.subr.mxu0 0.0
      %878 = vmatpush1.msra.mxu0 0.0
      %879 = vmatprep.subr.mxu0 0.0
      %880 = vmatpush1.msra.mxu0 0.0
      %881 = vmatprep.subr.mxu0 0.0
      %882 = vmatpush1.msra.mxu0 0.0
      %883 = vmatprep.subr.mxu0 0.0
      %884 = vmatpush1.msra.mxu0 0.0
      %885 = vmatprep.subr.mxu0 0.0
      %886 = vmatpush1.msra.mxu0 0.0
      %887 = vmatprep.subr.mxu0 0.0
      %888 = vmatpush1.msra.mxu0 0.0
      %889 = vmatprep.subr.mxu0 0.0
      %890 = vmatpush1.msra.mxu0 0.0
      %891 = vmatprep.subr.mxu0 0.0
      %892 = vmatpush1.msra.mxu0 0.0
      %893 = vmatprep.subr.mxu0 0.0
      %894 = vmatpush1.msra.mxu0 0.0
      %895 = vmatprep.subr.mxu0 0.0
      %896 = vmatpush1.msra.mxu0 0.0
      %897 = vmatprep.subr.mxu0 0.0
      %898 = vmatpush1.msra.mxu0 0.0
      %899 = vmatprep.subr.mxu0 0.0
      %900 = vmatpush1.msra.mxu0 0.0
      %901 = vmatprep.subr.mxu0 0.0
      %902 = vmatpush1.msra.mxu0 0.0
      %903 = vmatprep.subr.mxu0 0.0
      %904 = vmatpush1.msra.mxu0 0.0
      %905 = vmatprep.subr.mxu0 0.0
      %906 = vmatpush1.msra.mxu0 0.0
      %907 = vmatprep.subr.mxu0 0.0
      %908 = vmatpush1.msra.mxu0 0.0
      %909 = vmatprep.subr.mxu0 0.0
      %910 = vmatpush1.msra.mxu0 0.0
      %911 = vmatprep.subr.mxu0 0.0
      %912 = vmatpush1.msra.mxu0 0.0
      %913 = vmatprep.mubr.f32.mxu0 0.0
      %914 = vmatmul.mubr.f32.gmra.mrb[0].mxu0 %v847
      %v915 = vpop.f32.mrb[0].mxu0
      %v916 = vadd.f32 0.0, %v915
      %v917 = vpop.f32.mrb[0].mxu0
      %v918 = vadd.f32 0.0, %v917
      %919 = vdwg.mxu0
      %920 = vrot.lane.b32.xlu0 %v916, 17
      %v921 = vpop.permute.xlu0 %920
      %922 = vrot.lane.b32.xlu0 %v918, 17
      %v923 = vpop.permute.xlu0 %922
      %v924 = vsel %vm318, %v921, %v923
      %v925 = vsel %vm318, %v923, %v921
      %v926 = vmul.f32 %v925, %v324
      %v927 = vmul.f32 %v924, %v328
      %928 = vst [vmem:[#allocation2] sm:$0xff] %v926
      %929 = vst [vmem:[#allocation2 + $0x8] sm:$0xff] %v927
      %930 = vrot.lane.b32.xlu0 %v916, 16
      %v931 = vpop.permute.xlu0 %930
      %932 = vrot.lane.b32.xlu0 %v918, 16
      %v933 = vpop.permute.xlu0 %932
      %v934 = vsel %vm337, %v931, %v933
      %v935 = vsel %vm337, %v933, %v931
      %v936 = vmul.f32 %v935, %v343
      %v937 = vmul.f32 %v934, %v347
      %938 = vst [vmem:[#allocation2 + $0x10] sm:$0xff] %v936
      %939 = vst [vmem:[#allocation2 + $0x18] sm:$0xff] %v937
      %940 = vrot.lane.b32.xlu0 %v916, 15
      %v941 = vpop.permute.xlu0 %940
      %942 = vrot.lane.b32.xlu0 %v918, 15
      %v943 = vpop.permute.xlu0 %942
      %v944 = vsel %vm356, %v941, %v943
      %v945 = vsel %vm356, %v943, %v941
      %v946 = vmul.f32 %v945, %v362
      %v947 = vmul.f32 %v944, %v366
      %948 = vst [vmem:[#allocation2 + $0x20] sm:$0xff] %v946
      %949 = vst [vmem:[#allocation2 + $0x28] sm:$0xff] %v947
      %950 = vrot.lane.b32.xlu0 %v916, 1
      %v951 = vpop.permute.xlu0 %950
      %952 = vrot.lane.b32.xlu0 %v918, 1
      %v953 = vpop.permute.xlu0 %952
      %v954 = vsel %vm375, %v951, %v953
      %v955 = vsel %vm375, %v953, %v951
      %v956 = vmul.f32 %v955, %v381
      %v957 = vmul.f32 %v954, %v385
      %958 = vst [vmem:[#allocation2 + $0x30] sm:$0xff] %v956
      %959 = vst [vmem:[#allocation2 + $0x38] sm:$0xff] %v957
      %960 = vst [vmem:[#allocation2 + $0x40] sm:$0xff] %v916
      %961 = vst [vmem:[#allocation2 + $0x48] sm:$0xff] %v918
      %962 = vrot.lane.b32.xlu0 %v916, 127
      %v963 = vpop.permute.xlu0 %962
      %964 = vrot.lane.b32.xlu0 %v918, 127
      %v965 = vpop.permute.xlu0 %964
      %v966 = vsel %vm396, %v963, %v965
      %v967 = vsel %vm396, %v965, %v963
      %v968 = vmul.f32 %v966, %v402
      %v969 = vmul.f32 %v967, %v406
      %970 = vst [vmem:[#allocation2 + $0x50] sm:$0xff] %v968
      %971 = vst [vmem:[#allocation2 + $0x58] sm:$0xff] %v969
      %972 = vrot.lane.b32.xlu0 %v916, 113
      %v973 = vpop.permute.xlu0 %972
      %974 = vrot.lane.b32.xlu0 %v918, 113
      %v975 = vpop.permute.xlu0 %974
      %v976 = vsel %vm415, %v973, %v975
      %v977 = vsel %vm415, %v975, %v973
      %v978 = vmul.f32 %v976, %v421
      %v979 = vmul.f32 %v977, %v425
      %980 = vst [vmem:[#allocation2 + $0x60] sm:$0xff] %v978
      %981 = vst [vmem:[#allocation2 + $0x68] sm:$0xff] %v979
      %982 = vrot.lane.b32.xlu0 %v916, 112
      %v983 = vpop.permute.xlu0 %982
      %984 = vrot.lane.b32.xlu0 %v918, 112
      %v985 = vpop.permute.xlu0 %984
      %v986 = vsel %vm434, %v983, %v985
      %v987 = vsel %vm434, %v985, %v983
      %v988 = vmul.f32 %v986, %v440
      %v989 = vmul.f32 %v987, %v444
      %990 = vst [vmem:[#allocation2 + $0x70] sm:$0xff] %v988
      %991 = vst [vmem:[#allocation2 + $0x78] sm:$0xff] %v989
      %992 = vrot.lane.b32.xlu0 %v916, 111
      %v993 = vpop.permute.xlu0 %992
      %994 = vrot.lane.b32.xlu0 %v918, 111
      %v995 = vpop.permute.xlu0 %994
      %v996 = vsel %vm453, %v993, %v995
      %v997 = vsel %vm453, %v995, %v993
      %v998 = vmul.f32 %v996, %v459
      %v999 = vmul.f32 %v997, %v463
      %1000 = vst [vmem:[#allocation2 + $0x80] sm:$0xff] %v998
      %1001 = vst [vmem:[#allocation2 + $0x88] sm:$0xff] %v999
      %v1002 = vld [vmem:[%s5] sm:$0xff]
      %v1003 = vld [vmem:[#allocation2] sm:$0xff]
      %v1004 = vld [vmem:[#allocation2 + $0x8] sm:$0xff]
      %v1005 = vld [vmem:[#allocation2 + $0x10] sm:$0xff]
      %v1006 = vld [vmem:[#allocation2 + $0x18] sm:$0xff]
      %v1007 = vld [vmem:[#allocation2 + $0x20] sm:$0xff]
      %v1008 = vld [vmem:[#allocation2 + $0x28] sm:$0xff]
      %v1009 = vld [vmem:[#allocation2 + $0x30] sm:$0xff]
      %v1010 = vld [vmem:[#allocation2 + $0x38] sm:$0xff]
      %v1011 = vld [vmem:[#allocation2 + $0x40] sm:$0xff]
      %v1012 = vld [vmem:[#allocation2 + $0x48] sm:$0xff]
      %v1013 = vld [vmem:[#allocation2 + $0x50] sm:$0xff]
      %v1014 = vld [vmem:[#allocation2 + $0x58] sm:$0xff]
      %v1015 = vld [vmem:[#allocation2 + $0x60] sm:$0xff]
      %v1016 = vld [vmem:[#allocation2 + $0x68] sm:$0xff]
      %v1017 = vld [vmem:[#allocation2 + $0x70] sm:$0xff]
      %v1018 = vld [vmem:[#allocation2 + $0x78] sm:$0xff]
      %v1019 = vld [vmem:[#allocation2 + $0x80] sm:$0xff]
      %v1020 = vld [vmem:[#allocation2 + $0x88] sm:$0xff]
      %v1021 = vld [vmem:[#allocation2 + $0x90] sm:$0xff]
      %v1022 = vld [vmem:[#allocation2 + $0x98] sm:$0xff]
      %v1024 = vsel %vm491, %v1002, 0
      %1026 = vmatprep.subr.mxu0 %v1004
      %1027 = vmatpush1.msra.mxu0 %v1003
      %1028 = vmatprep.subr.mxu0 %v1006
      %1029 = vmatpush1.msra.mxu0 %v1005
      %1030 = vmatprep.subr.mxu0 %v1008
      %1031 = vmatpush1.msra.mxu0 %v1007
      %1032 = vmatprep.subr.mxu0 %v1010
      %1033 = vmatpush1.msra.mxu0 %v1009
      %1034 = vmatprep.subr.mxu0 %v1012
      %1035 = vmatpush1.msra.mxu0 %v1011
      %1036 = vmatprep.subr.mxu0 %v1014
      %1037 = vmatpush1.msra.mxu0 %v1013
      %1038 = vmatprep.subr.mxu0 %v1016
      %1039 = vmatpush1.msra.mxu0 %v1015
      %1040 = vmatprep.subr.mxu0 %v1018
      %1041 = vmatpush1.msra.mxu0 %v1017
      %1042 = vmatprep.subr.mxu0 %v1020
      %1043 = vmatpush1.msra.mxu0 %v1019
      %1044 = vmatprep.subr.mxu0 %v1022
      %1045 = vmatpush1.msra.mxu0 %v1021
      %1046 = vmatprep.subr.mxu0 0.0
      %1047 = vmatpush1.msra.mxu0 0.0
      %1048 = vmatprep.subr.mxu0 0.0
      %1049 = vmatpush1.msra.mxu0 0.0
      %1050 = vmatprep.subr.mxu0 0.0
      %1051 = vmatpush1.msra.mxu0 0.0
      %1052 = vmatprep.subr.mxu0 0.0
      %1053 = vmatpush1.msra.mxu0 0.0
      %1054 = vmatprep.subr.mxu0 0.0
      %1055 = vmatpush1.msra.mxu0 0.0
      %1056 = vmatprep.subr.mxu0 0.0
      %1057 = vmatpush1.msra.mxu0 0.0
      %1058 = vmatprep.subr.mxu0 0.0
      %1059 = vmatpush1.msra.mxu0 0.0
      %1060 = vmatprep.subr.mxu0 0.0
      %1061 = vmatpush1.msra.mxu0 0.0
      %1062 = vmatprep.subr.mxu0 0.0
      %1063 = vmatpush1.msra.mxu0 0.0
      %1064 = vmatprep.subr.mxu0 0.0
      %1065 = vmatpush1.msra.mxu0 0.0
      %1066 = vmatprep.subr.mxu0 0.0
      %1067 = vmatpush1.msra.mxu0 0.0
      %1068 = vmatprep.subr.mxu0 0.0
      %1069 = vmatpush1.msra.mxu0 0.0
      %1070 = vmatprep.subr.mxu0 0.0
      %1071 = vmatpush1.msra.mxu0 0.0
      %1072 = vmatprep.subr.mxu0 0.0
      %1073 = vmatpush1.msra.mxu0 0.0
      %1074 = vmatprep.subr.mxu0 0.0
      %1075 = vmatpush1.msra.mxu0 0.0
      %1076 = vmatprep.subr.mxu0 0.0
      %1077 = vmatpush1.msra.mxu0 0.0
      %1078 = vmatprep.subr.mxu0 0.0
      %1079 = vmatpush1.msra.mxu0 0.0
      %1080 = vmatprep.subr.mxu0 0.0
      %1081 = vmatpush1.msra.mxu0 0.0
      %1082 = vmatprep.subr.mxu0 0.0
      %1083 = vmatpush1.msra.mxu0 0.0
      %1084 = vmatprep.subr.mxu0 0.0
      %1085 = vmatpush1.msra.mxu0 0.0
      %1086 = vmatprep.subr.mxu0 0.0
      %1087 = vmatpush1.msra.mxu0 0.0
      %1088 = vmatprep.subr.mxu0 0.0
      %1089 = vmatpush1.msra.mxu0 0.0
      %1090 = vmatprep.mubr.f32.mxu0 0.0
      %1091 = vmatmul.mubr.f32.gmra.mrb[0].mxu0 %v1024
      %v1092 = vpop.f32.mrb[0].mxu0
      %v1093 = vadd.f32 0.0, %v1092
      %v1094 = vpop.f32.mrb[0].mxu0
      %v1095 = vadd.f32 0.0, %v1094
      %1096 = vdwg.mxu0
      %1097 = vrot.lane.b32.xlu0 %v1093, 17
      %v1098 = vpop.permute.xlu0 %1097
      %1099 = vrot.lane.b32.xlu0 %v1095, 17
      %v1100 = vpop.permute.xlu0 %1099
      %v1101 = vsel %vm318, %v1098, %v1100
      %v1102 = vsel %vm318, %v1100, %v1098
      %v1103 = vmul.f32 %v1102, %v324
      %v1104 = vmul.f32 %v1101, %v328
      %1105 = vst [vmem:[#allocation2] sm:$0xff] %v1103
      %1106 = vst [vmem:[#allocation2 + $0x8] sm:$0xff] %v1104
      %1107 = vrot.lane.b32.xlu0 %v1093, 16
      %v1108 = vpop.permute.xlu0 %1107
      %1109 = vrot.lane.b32.xlu0 %v1095, 16
      %v1110 = vpop.permute.xlu0 %1109
      %v1111 = vsel %vm337, %v1108, %v1110
      %v1112 = vsel %vm337, %v1110, %v1108
      %v1113 = vmul.f32 %v1112, %v343
      %v1114 = vmul.f32 %v1111, %v347
      %1115 = vst [vmem:[#allocation2 + $0x10] sm:$0xff] %v1113
      %1116 = vst [vmem:[#allocation2 + $0x18] sm:$0xff] %v1114
      %1117 = vrot.lane.b32.xlu0 %v1093, 15
      %v1118 = vpop.permute.xlu0 %1117
      %1119 = vrot.lane.b32.xlu0 %v1095, 15
      %v1120 = vpop.permute.xlu0 %1119
      %v1121 = vsel %vm356, %v1118, %v1120
      %v1122 = vsel %vm356, %v1120, %v1118
      %v1123 = vmul.f32 %v1122, %v362
      %v1124 = vmul.f32 %v1121, %v366
      %1125 = vst [vmem:[#allocation2 + $0x20] sm:$0xff] %v1123
      %1126 = vst [vmem:[#allocation2 + $0x28] sm:$0xff] %v1124
      %1127 = vrot.lane.b32.xlu0 %v1093, 1
      %v1128 = vpop.permute.xlu0 %1127
      %1129 = vrot.lane.b32.xlu0 %v1095, 1
      %v1130 = vpop.permute.xlu0 %1129
      %v1131 = vsel %vm375, %v1128, %v1130
      %v1132 = vsel %vm375, %v1130, %v1128
      %v1133 = vmul.f32 %v1132, %v381
      %v1134 = vmul.f32 %v1131, %v385
      %1135 = vst [vmem:[#allocation2 + $0x30] sm:$0xff] %v1133
      %1136 = vst [vmem:[#allocation2 + $0x38] sm:$0xff] %v1134
      %1137 = vst [vmem:[#allocation2 + $0x40] sm:$0xff] %v1093
      %1138 = vst [vmem:[#allocation2 + $0x48] sm:$0xff] %v1095
      %1139 = vrot.lane.b32.xlu0 %v1093, 127
      %v1140 = vpop.permute.xlu0 %1139
      %1141 = vrot.lane.b32.xlu0 %v1095, 127
      %v1142 = vpop.permute.xlu0 %1141
      %v1143 = vsel %vm396, %v1140, %v1142
      %v1144 = vsel %vm396, %v1142, %v1140
      %v1145 = vmul.f32 %v1143, %v402
      %v1146 = vmul.f32 %v1144, %v406
      %1147 = vst [vmem:[#allocation2 + $0x50] sm:$0xff] %v1145
      %1148 = vst [vmem:[#allocation2 + $0x58] sm:$0xff] %v1146
      %1149 = vrot.lane.b32.xlu0 %v1093, 113
      %v1150 = vpop.permute.xlu0 %1149
      %1151 = vrot.lane.b32.xlu0 %v1095, 113
      %v1152 = vpop.permute.xlu0 %1151
      %v1153 = vsel %vm415, %v1150, %v1152
      %v1154 = vsel %vm415, %v1152, %v1150
      %v1155 = vmul.f32 %v1153, %v421
      %v1156 = vmul.f32 %v1154, %v425
      %1157 = vst [vmem:[#allocation2 + $0x60] sm:$0xff] %v1155
      %1158 = vst [vmem:[#allocation2 + $0x68] sm:$0xff] %v1156
      %1159 = vrot.lane.b32.xlu0 %v1093, 112
      %v1160 = vpop.permute.xlu0 %1159
      %1161 = vrot.lane.b32.xlu0 %v1095, 112
      %v1162 = vpop.permute.xlu0 %1161
      %v1163 = vsel %vm434, %v1160, %v1162
      %v1164 = vsel %vm434, %v1162, %v1160
      %v1165 = vmul.f32 %v1163, %v440
      %v1166 = vmul.f32 %v1164, %v444
      %1167 = vst [vmem:[#allocation2 + $0x70] sm:$0xff] %v1165
      %1168 = vst [vmem:[#allocation2 + $0x78] sm:$0xff] %v1166
      %1169 = vrot.lane.b32.xlu0 %v1093, 111
      %v1170 = vpop.permute.xlu0 %1169
      %1171 = vrot.lane.b32.xlu0 %v1095, 111
      %v1172 = vpop.permute.xlu0 %1171
      %v1173 = vsel %vm453, %v1170, %v1172
      %v1174 = vsel %vm453, %v1172, %v1170
      %v1175 = vmul.f32 %v1173, %v459
      %v1176 = vmul.f32 %v1174, %v463
      %1177 = vst [vmem:[#allocation2 + $0x80] sm:$0xff] %v1175
      %1178 = vst [vmem:[#allocation2 + $0x88] sm:$0xff] %v1176
      %v1179 = vld [vmem:[%s6] sm:$0xff]
      %v1180 = vld [vmem:[#allocation2] sm:$0xff]
      %v1181 = vld [vmem:[#allocation2 + $0x8] sm:$0xff]
      %v1182 = vld [vmem:[#allocation2 + $0x10] sm:$0xff]
      %v1183 = vld [vmem:[#allocation2 + $0x18] sm:$0xff]
      %v1184 = vld [vmem:[#allocation2 + $0x20] sm:$0xff]
      %v1185 = vld [vmem:[#allocation2 + $0x28] sm:$0xff]
      %v1186 = vld [vmem:[#allocation2 + $0x30] sm:$0xff]
      %v1187 = vld [vmem:[#allocation2 + $0x38] sm:$0xff]
      %v1188 = vld [vmem:[#allocation2 + $0x40] sm:$0xff]
      %v1189 = vld [vmem:[#allocation2 + $0x48] sm:$0xff]
      %v1190 = vld [vmem:[#allocation2 + $0x50] sm:$0xff]
      %v1191 = vld [vmem:[#allocation2 + $0x58] sm:$0xff]
      %v1192 = vld [vmem:[#allocation2 + $0x60] sm:$0xff]
      %v1193 = vld [vmem:[#allocation2 + $0x68] sm:$0xff]
      %v1194 = vld [vmem:[#allocation2 + $0x70] sm:$0xff]
      %v1195 = vld [vmem:[#allocation2 + $0x78] sm:$0xff]
      %v1196 = vld [vmem:[#allocation2 + $0x80] sm:$0xff]
      %v1197 = vld [vmem:[#allocation2 + $0x88] sm:$0xff]
      %v1198 = vld [vmem:[#allocation2 + $0x90] sm:$0xff]
      %v1199 = vld [vmem:[#allocation2 + $0x98] sm:$0xff]
      %v1201 = vsel %vm491, %v1179, 0
      %1203 = vmatprep.subr.mxu0 %v1181
      %1204 = vmatpush1.msra.mxu0 %v1180
      %1205 = vmatprep.subr.mxu0 %v1183
      %1206 = vmatpush1.msra.mxu0 %v1182
      %1207 = vmatprep.subr.mxu0 %v1185
      %1208 = vmatpush1.msra.mxu0 %v1184
      %1209 = vmatprep.subr.mxu0 %v1187
      %1210 = vmatpush1.msra.mxu0 %v1186
      %1211 = vmatprep.subr.mxu0 %v1189
      %1212 = vmatpush1.msra.mxu0 %v1188
      %1213 = vmatprep.subr.mxu0 %v1191
      %1214 = vmatpush1.msra.mxu0 %v1190
      %1215 = vmatprep.subr.mxu0 %v1193
      %1216 = vmatpush1.msra.mxu0 %v1192
      %1217 = vmatprep.subr.mxu0 %v1195
      %1218 = vmatpush1.msra.mxu0 %v1194
      %1219 = vmatprep.subr.mxu0 %v1197
      %1220 = vmatpush1.msra.mxu0 %v1196
      %1221 = vmatprep.subr.mxu0 %v1199
      %1222 = vmatpush1.msra.mxu0 %v1198
      %1223 = vmatprep.subr.mxu0 0.0
      %1224 = vmatpush1.msra.mxu0 0.0
      %1225 = vmatprep.subr.mxu0 0.0
      %1226 = vmatpush1.msra.mxu0 0.0
      %1227 = vmatprep.subr.mxu0 0.0
      %1228 = vmatpush1.msra.mxu0 0.0
      %1229 = vmatprep.subr.mxu0 0.0
      %1230 = vmatpush1.msra.mxu0 0.0
      %1231 = vmatprep.subr.mxu0 0.0
      %1232 = vmatpush1.msra.mxu0 0.0
      %1233 = vmatprep.subr.mxu0 0.0
      %1234 = vmatpush1.msra.mxu0 0.0
      %1235 = vmatprep.subr.mxu0 0.0
      %1236 = vmatpush1.msra.mxu0 0.0
      %1237 = vmatprep.subr.mxu0 0.0
      %1238 = vmatpush1.msra.mxu0 0.0
      %1239 = vmatprep.subr.mxu0 0.0
      %1240 = vmatpush1.msra.mxu0 0.0
      %1241 = vmatprep.subr.mxu0 0.0
      %1242 = vmatpush1.msra.mxu0 0.0
      %1243 = vmatprep.subr.mxu0 0.0
      %1244 = vmatpush1.msra.mxu0 0.0
      %1245 = vmatprep.subr.mxu0 0.0
      %1246 = vmatpush1.msra.mxu0 0.0
      %1247 = vmatprep.subr.mxu0 0.0
      %1248 = vmatpush1.msra.mxu0 0.0
      %1249 = vmatprep.subr.mxu0 0.0
      %1250 = vmatpush1.msra.mxu0 0.0
      %1251 = vmatprep.subr.mxu0 0.0
      %1252 = vmatpush1.msra.mxu0 0.0
      %1253 = vmatprep.subr.mxu0 0.0
      %1254 = vmatpush1.msra.mxu0 0.0
      %1255 = vmatprep.subr.mxu0 0.0
      %1256 = vmatpush1.msra.mxu0 0.0
      %1257 = vmatprep.subr.mxu0 0.0
      %1258 = vmatpush1.msra.mxu0 0.0
      %1259 = vmatprep.subr.mxu0 0.0
      %1260 = vmatpush1.msra.mxu0 0.0
      %1261 = vmatprep.subr.mxu0 0.0
      %1262 = vmatpush1.msra.mxu0 0.0
      %1263 = vmatprep.subr.mxu0 0.0
      %1264 = vmatpush1.msra.mxu0 0.0
      %1265 = vmatprep.subr.mxu0 0.0
      %1266 = vmatpush1.msra.mxu0 0.0
      %1267 = vmatprep.mubr.f32.mxu0 0.0
      %1268 = vmatmul.mubr.f32.gmra.mrb[0].mxu0 %v1201
      %v1269 = vpop.f32.mrb[0].mxu0
      %v1270 = vadd.f32 0.0, %v1269
      %v1271 = vpop.f32.mrb[0].mxu0
      %v1272 = vadd.f32 0.0, %v1271
      %1273 = vdwg.mxu0
      %1274 = vrot.lane.b32.xlu0 %v1270, 17
      %v1275 = vpop.permute.xlu0 %1274
      %1276 = vrot.lane.b32.xlu0 %v1272, 17
      %v1277 = vpop.permute.xlu0 %1276
      %v1278 = vsel %vm318, %v1275, %v1277
      %v1279 = vsel %vm318, %v1277, %v1275
      %v1280 = vmul.f32 %v1279, %v324
      %v1281 = vmul.f32 %v1278, %v328
      %1282 = vst [vmem:[#allocation2] sm:$0xff] %v1280
      %1283 = vst [vmem:[#allocation2 + $0x8] sm:$0xff] %v1281
      %1284 = vrot.lane.b32.xlu0 %v1270, 16
      %v1285 = vpop.permute.xlu0 %1284
      %1286 = vrot.lane.b32.xlu0 %v1272, 16
      %v1287 = vpop.permute.xlu0 %1286
      %v1288 = vsel %vm337, %v1285, %v1287
      %v1289 = vsel %vm337, %v1287, %v1285
      %v1290 = vmul.f32 %v1289, %v343
      %v1291 = vmul.f32 %v1288, %v347
      %1292 = vst [vmem:[#allocation2 + $0x10] sm:$0xff] %v1290
      %1293 = vst [vmem:[#allocation2 + $0x18] sm:$0xff] %v1291
      %1294 = vrot.lane.b32.xlu0 %v1270, 15
      %v1295 = vpop.permute.xlu0 %1294
      %1296 = vrot.lane.b32.xlu0 %v1272, 15
      %v1297 = vpop.permute.xlu0 %1296
      %v1298 = vsel %vm356, %v1295, %v1297
      %v1299 = vsel %vm356, %v1297, %v1295
      %v1300 = vmul.f32 %v1299, %v362
      %v1301 = vmul.f32 %v1298, %v366
      %1302 = vst [vmem:[#allocation2 + $0x20] sm:$0xff] %v1300
      %1303 = vst [vmem:[#allocation2 + $0x28] sm:$0xff] %v1301
      %1304 = vrot.lane.b32.xlu0 %v1270, 1
      %v1305 = vpop.permute.xlu0 %1304
      %1306 = vrot.lane.b32.xlu0 %v1272, 1
      %v1307 = vpop.permute.xlu0 %1306
      %v1308 = vsel %vm375, %v1305, %v1307
      %v1309 = vsel %vm375, %v1307, %v1305
      %v1310 = vmul.f32 %v1309, %v381
      %v1311 = vmul.f32 %v1308, %v385
      %1312 = vst [vmem:[#allocation2 + $0x30] sm:$0xff] %v1310
      %1313 = vst [vmem:[#allocation2 + $0x38] sm:$0xff] %v1311
      %1314 = vst [vmem:[#allocation2 + $0x40] sm:$0xff] %v1270
      %1315 = vst [vmem:[#allocation2 + $0x48] sm:$0xff] %v1272
      %1316 = vrot.lane.b32.xlu0 %v1270, 127
      %v1317 = vpop.permute.xlu0 %1316
      %1318 = vrot.lane.b32.xlu0 %v1272, 127
      %v1319 = vpop.permute.xlu0 %1318
      %v1320 = vsel %vm396, %v1317, %v1319
      %v1321 = vsel %vm396, %v1319, %v1317
      %v1322 = vmul.f32 %v1320, %v402
      %v1323 = vmul.f32 %v1321, %v406
      %1324 = vst [vmem:[#allocation2 + $0x50] sm:$0xff] %v1322
      %1325 = vst [vmem:[#allocation2 + $0x58] sm:$0xff] %v1323
      %1326 = vrot.lane.b32.xlu0 %v1270, 113
      %v1327 = vpop.permute.xlu0 %1326
      %1328 = vrot.lane.b32.xlu0 %v1272, 113
      %v1329 = vpop.permute.xlu0 %1328
      %v1330 = vsel %vm415, %v1327, %v1329
      %v1331 = vsel %vm415, %v1329, %v1327
      %v1332 = vmul.f32 %v1330, %v421
      %v1333 = vmul.f32 %v1331, %v425
      %1334 = vst [vmem:[#allocation2 + $0x60] sm:$0xff] %v1332
      %1335 = vst [vmem:[#allocation2 + $0x68] sm:$0xff] %v1333
      %1336 = vrot.lane.b32.xlu0 %v1270, 112
      %v1337 = vpop.permute.xlu0 %1336
      %1338 = vrot.lane.b32.xlu0 %v1272, 112
      %v1339 = vpop.permute.xlu0 %1338
      %v1340 = vsel %vm434, %v1337, %v1339
      %v1341 = vsel %vm434, %v1339, %v1337
      %v1342 = vmul.f32 %v1340, %v440
      %v1343 = vmul.f32 %v1341, %v444
      %1344 = vst [vmem:[#allocation2 + $0x70] sm:$0xff] %v1342
      %1345 = vst [vmem:[#allocation2 + $0x78] sm:$0xff] %v1343
      %1346 = vrot.lane.b32.xlu0 %v1270, 111
      %v1347 = vpop.permute.xlu0 %1346
      %1348 = vrot.lane.b32.xlu0 %v1272, 111
      %v1349 = vpop.permute.xlu0 %1348
      %v1350 = vsel %vm453, %v1347, %v1349
      %v1351 = vsel %vm453, %v1349, %v1347
      %v1352 = vmul.f32 %v1350, %v459
      %v1353 = vmul.f32 %v1351, %v463
      %1354 = vst [vmem:[#allocation2 + $0x80] sm:$0xff] %v1352
      %1355 = vst [vmem:[#allocation2 + $0x88] sm:$0xff] %v1353
      %v1356 = vld [vmem:[%s7] sm:$0xff]
      %v1357 = vld [vmem:[#allocation2] sm:$0xff]
      %v1358 = vld [vmem:[#allocation2 + $0x8] sm:$0xff]
      %v1359 = vld [vmem:[#allocation2 + $0x10] sm:$0xff]
      %v1360 = vld [vmem:[#allocation2 + $0x18] sm:$0xff]
      %v1361 = vld [vmem:[#allocation2 + $0x20] sm:$0xff]
      %v1362 = vld [vmem:[#allocation2 + $0x28] sm:$0xff]
      %v1363 = vld [vmem:[#allocation2 + $0x30] sm:$0xff]
      %v1364 = vld [vmem:[#allocation2 + $0x38] sm:$0xff]
      %v1365 = vld [vmem:[#allocation2 + $0x40] sm:$0xff]
      %v1366 = vld [vmem:[#allocation2 + $0x48] sm:$0xff]
      %v1367 = vld [vmem:[#allocation2 + $0x50] sm:$0xff]
      %v1368 = vld [vmem:[#allocation2 + $0x58] sm:$0xff]
      %v1369 = vld [vmem:[#allocation2 + $0x60] sm:$0xff]
      %v1370 = vld [vmem:[#allocation2 + $0x68] sm:$0xff]
      %v1371 = vld [vmem:[#allocation2 + $0x70] sm:$0xff]
      %v1372 = vld [vmem:[#allocation2 + $0x78] sm:$0xff]
      %v1373 = vld [vmem:[#allocation2 + $0x80] sm:$0xff]
      %v1374 = vld [vmem:[#allocation2 + $0x88] sm:$0xff]
      %v1375 = vld [vmem:[#allocation2 + $0x90] sm:$0xff]
      %v1376 = vld [vmem:[#allocation2 + $0x98] sm:$0xff]
      %v1378 = vsel %vm491, %v1356, 0
      %1380 = vmatprep.subr.mxu0 %v1358
      %1381 = vmatpush1.msra.mxu0 %v1357
      %1382 = vmatprep.subr.mxu0 %v1360
      %1383 = vmatpush1.msra.mxu0 %v1359
      %1384 = vmatprep.subr.mxu0 %v1362
      %1385 = vmatpush1.msra.mxu0 %v1361
      %1386 = vmatprep.subr.mxu0 %v1364
      %1387 = vmatpush1.msra.mxu0 %v1363
      %1388 = vmatprep.subr.mxu0 %v1366
      %1389 = vmatpush1.msra.mxu0 %v1365
      %1390 = vmatprep.subr.mxu0 %v1368
      %1391 = vmatpush1.msra.mxu0 %v1367
      %1392 = vmatprep.subr.mxu0 %v1370
      %1393 = vmatpush1.msra.mxu0 %v1369
      %1394 = vmatprep.subr.mxu0 %v1372
      %1395 = vmatpush1.msra.mxu0 %v1371
      %1396 = vmatprep.subr.mxu0 %v1374
      %1397 = vmatpush1.msra.mxu0 %v1373
      %1398 = vmatprep.subr.mxu0 %v1376
      %1399 = vmatpush1.msra.mxu0 %v1375
      %1400 = vmatprep.subr.mxu0 0.0
      %1401 = vmatpush1.msra.mxu0 0.0
      %1402 = vmatprep.subr.mxu0 0.0
      %1403 = vmatpush1.msra.mxu0 0.0
      %1404 = vmatprep.subr.mxu0 0.0
      %1405 = vmatpush1.msra.mxu0 0.0
      %1406 = vmatprep.subr.mxu0 0.0
      %1407 = vmatpush1.msra.mxu0 0.0
      %1408 = vmatprep.subr.mxu0 0.0
      %1409 = vmatpush1.msra.mxu0 0.0
      %1410 = vmatprep.subr.mxu0 0.0
      %1411 = vmatpush1.msra.mxu0 0.0
      %1412 = vmatprep.subr.mxu0 0.0
      %1413 = vmatpush1.msra.mxu0 0.0
      %1414 = vmatprep.subr.mxu0 0.0
      %1415 = vmatpush1.msra.mxu0 0.0
      %1416 = vmatprep.subr.mxu0 0.0
      %1417 = vmatpush1.msra.mxu0 0.0
      %1418 = vmatprep.subr.mxu0 0.0
      %1419 = vmatpush1.msra.mxu0 0.0
      %1420 = vmatprep.subr.mxu0 0.0
      %1421 = vmatpush1.msra.mxu0 0.0
      %1422 = vmatprep.subr.mxu0 0.0
      %1423 = vmatpush1.msra.mxu0 0.0
      %1424 = vmatprep.subr.mxu0 0.0
      %1425 = vmatpush1.msra.mxu0 0.0
      %1426 = vmatprep.subr.mxu0 0.0
      %1427 = vmatpush1.msra.mxu0 0.0
      %1428 = vmatprep.subr.mxu0 0.0
      %1429 = vmatpush1.msra.mxu0 0.0
      %1430 = vmatprep.subr.mxu0 0.0
      %1431 = vmatpush1.msra.mxu0 0.0
      %1432 = vmatprep.subr.mxu0 0.0
      %1433 = vmatpush1.msra.mxu0 0.0
      %1434 = vmatprep.subr.mxu0 0.0
      %1435 = vmatpush1.msra.mxu0 0.0
      %1436 = vmatprep.subr.mxu0 0.0
      %1437 = vmatpush1.msra.mxu0 0.0
      %1438 = vmatprep.subr.mxu0 0.0
      %1439 = vmatpush1.msra.mxu0 0.0
      %1440 = vmatprep.subr.mxu0 0.0
      %1441 = vmatpush1.msra.mxu0 0.0
      %1442 = vmatprep.subr.mxu0 0.0
      %1443 = vmatpush1.msra.mxu0 0.0
      %1444 = vmatprep.mubr.f32.mxu0 0.0
      %1445 = vmatmul.mubr.f32.gmra.mrb[0].mxu0 %v1378
      %v1446 = vpop.f32.mrb[0].mxu0
      %v1447 = vadd.f32 0.0, %v1446
      %v1448 = vpop.f32.mrb[0].mxu0
      %v1449 = vadd.f32 0.0, %v1448
      %1450 = vdwg.mxu0
      %1451 = vst [vmem:[%s305] sm:$0xff] %v1447
      %1452 = vst [vmem:[%s305 + $0x8] sm:$0xff] %v1449
      %p1453 = scmp.lt.s32.totalorder %s19, 1
      %s1454 = scalar_select %p1453, %s19, 1
      %s1455 = smul.addr %s1454, 2
      %s1456 = smul.addr %s1455, 8
      %s1457 = scalar_lea.vmem %s8, %s1456
      // Predicated region
      $region53: #{conn3_pallas.1} parent=51 // pred_check
        %p1458 = pneg %p210
      $region54: #{conn3_pallas.1} parent=51 // pred_check_branch
        %1460 = sbr.rel (%p1458) target = $region56
      $region55: #{conn3_pallas.1} parent=51 // pred_region
        _
      $region56: #{conn3_pallas.1} parent=51 // pred_fallthru
        _
    $region52: #{conn3_pallas.1} parent=5 // pred_fallthru
      _
    %p1461 = scmp.le.s32.totalorder 2, %s14
    // Predicated region
    $region57: #{conn3_pallas.1} parent=5 // pred_check
      %p1462 = pneg %p1461
    $region58: #{conn3_pallas.1} parent=5 // pred_check_branch
      %1464 = sbr.rel (%p1462) target = $region60
    $region59: #{conn3_pallas.1} parent=5 // pred_region
      %s1465 = ssub.s32 %s14, 2
      // Predicated region
      $region61: #{conn3_pallas.1} parent=59 // pred_check
        %p1466 = pneg %p216
      $region62: #{conn3_pallas.1} parent=59 // pred_check_branch
        %1468 = sbr.rel (%p1466) target = $region64
      $region63: #{conn3_pallas.1} parent=59 // pred_region
        %p1469 = scmp.lt.s32.totalorder %s20, 1
        %s1470 = scalar_select %p1469, %s20, 1
        %s1471 = smul.addr %s1470, 2
        %s1472 = smul.addr %s1471, 8
        %s1473 = scalar_lea.vmem %s8, %s1472
      $region64: #{conn3_pallas.1} parent=59 // pred_fallthru
        _
    $region60: #{conn3_pallas.1} parent=5 // pred_fallthru
      _
  $region6: #{conn3_pallas.1} parent=0 // loop_footer
    %s18 = sadd.s32 1, %s14
  $region7: #{conn3_pallas.1} parent=0 // loop_footer_branch
    %13 = sbr.rel target = $region3
  $region8: #{conn3_pallas.1} parent=0 // loop_exit
    _

</llo_original>
